<compile_context>
chip_gen: v5e
topology: v5e:2x2
jax: 0.10.0
libtpu: 0.0.40
codegen_flags: <defaults>
</compile_context>

<pallas_src>
import math

import jax
import jax.numpy as jnp
import numpy as np
from jax.experimental import pallas as pl

# ----------------------- synthetic encoder configuration ---------------------
VOCAB = 128
HIDDEN = 32
NUM_HEADS = 2
HEAD_DIM = HIDDEN // NUM_HEADS
FFN = 64
NUM_LAYERS = 2
SEQ = 8
BATCH = 4
MASK_TOKEN_ID = 103          # bert-base-uncased [MASK] id (from CLASSES table)
LN_EPS = 1e-12
NEG_INF = -1e9

assert SEQ & (SEQ - 1) == 0, "SEQ must be a power of two (shift-based batch index)"
LOG2_SEQ = SEQ.bit_length() - 1

# -------- layout of the single packed f32 parameter table [FTAB_ROWS, 128] ----
TAB = 160                    # embedding rows: word 0..127, type 128..129, pos 130..137
ROW_EMB_G = TAB
ROW_EMB_B = TAB + 1
ROW_LAYER0 = TAB + 2
LAYER_ROWS = 8               # b_qkv, b_o, g1, beta1, b1, b2, g2, beta2
ROW_CLS_W = ROW_LAYER0 + NUM_LAYERS * LAYER_ROWS
ROW_CLS_B = ROW_CLS_W + 1
FTAB_ROWS = ((ROW_CLS_B + 1 + 7) // 8) * 8

OUT_LOGIT_COL = HIDDEN
OUT_LOSS_COL = HIDDEN + 1


# ------------------------------ shared math ----------------------------------
def _layer_norm(x, g, b):
    mu = jnp.mean(x, axis=-1, keepdims=True)
    var = jnp.mean(jnp.square(x - mu), axis=-1, keepdims=True)
    return (x - mu) * jax.lax.rsqrt(var + LN_EPS) * g + b


def _gelu(x):
    c = math.sqrt(2.0 / math.pi)
    return 0.5 * x * (1.0 + jnp.tanh(c * (x + 0.044715 * x * x * x)))


# --------------------- single fused Pallas kernel (whole model) --------------
def fused_forward_kernel(ids_ref, tt_ref, km_ref, y_ref,
                         ftab_ref, wqkv_ref, wo_ref, w1_ref, w2_ref,
                         out_ref):
    f32 = jnp.float32
    bf16 = jnp.bfloat16
    N = BATCH * SEQ

    def prow(r, width):                       # [1, width] f32 param row
        return ftab_ref[r:r + 1, 0:width]

    ids = ids_ref[...]                        # [N, 1] int32
    tt = tt_ref[...]                          # [N, 1] int32

    # ---- embeddings (word + token-type + position) as one one-hot matmul ----
    col = jax.lax.broadcasted_iota(jnp.int32, (N, TAB), 1)
    row = jax.lax.broadcasted_iota(jnp.int32, (N, TAB), 0)
    pos = jnp.bitwise_and(row, SEQ - 1)       # position = flat token index mod SEQ
    onehot = (col == ids) | (col == VOCAB + tt) | (col == VOCAB + 2 + pos)
    sel = jnp.where(onehot, 1.0, 0.0).astype(bf16)
    emb_tab = ftab_ref[0:TAB, 0:HIDDEN].astype(bf16)   # exact: table pre-rounded to bf16
    emb = jnp.dot(sel, emb_tab, preferred_element_type=f32)          # [N, H]
    x = _layer_norm(emb, prow(ROW_EMB_G, HIDDEN), prow(ROW_EMB_B, HIDDEN))

    # ---- additive attention bias: block-diagonal (per sequence) + key padding ----
    rq = jax.lax.broadcasted_iota(jnp.int32, (N, N), 0)
    ck = jax.lax.broadcasted_iota(jnp.int32, (N, N), 1)
    same_seq = (rq >> LOG2_SEQ) == (ck >> LOG2_SEQ)
    key_ok = km_ref[...] > 0                                          # [1, N]
    bias = jnp.where(jnp.logical_and(same_seq, key_ok), 0.0, NEG_INF)

    scale = 1.0 / math.sqrt(HEAD_DIM)
    for l in range(NUM_LAYERS):               # static, fully unrolled
        base = ROW_LAYER0 + l * LAYER_ROWS
        # fused Q|K|V projection: single [N,H] @ [H,3H] bf16 matmul per layer
        qkv = jnp.dot(x.astype(bf16), wqkv_ref[l],
                      preferred_element_type=f32) + prow(base + 0, 3 * HIDDEN)
        qkvb = qkv.astype(bf16)               # one cast covers q, k, v for all heads
        ctxs = []
        for h in range(NUM_HEADS):            # static; per-head tiles are lane slices
            lo = h * HEAD_DIM
            qh = qkvb[:, lo:lo + HEAD_DIM]
            kh = qkvb[:, HIDDEN + lo:HIDDEN + lo + HEAD_DIM]
            vh = qkvb[:, 2 * HIDDEN + lo:2 * HIDDEN + lo + HEAD_DIM]
            s = jax.lax.dot_general(qh, kh, (((1,), (1,)), ((), ())),
                                    preferred_element_type=f32) * scale + bias
            s = s - jnp.max(s, axis=-1, keepdims=True)
            p = jnp.exp(s)
            p = p * pl.reciprocal(jnp.sum(p, axis=-1, keepdims=True), approx=True)
            ctxs.append(jnp.dot(p.astype(bf16), vh, preferred_element_type=f32))
        # heads back on the lane axis -> single full-width output projection
        ctx = jnp.concatenate(ctxs, axis=-1)                          # [N, H]
        attn = jnp.dot(ctx.astype(bf16), wo_ref[l],
                       preferred_element_type=f32) + prow(base + 1, HIDDEN)
        h1 = _layer_norm(x + attn, prow(base + 2, HIDDEN), prow(base + 3, HIDDEN))
        f = _gelu(jnp.dot(h1.astype(bf16), w1_ref[l],
                          preferred_element_type=f32) + prow(base + 4, FFN))
        f = jnp.dot(f.astype(bf16), w2_ref[l],
                    preferred_element_type=f32) + prow(base + 5, HIDDEN)
        x = _layer_norm(h1 + f, prow(base + 6, HIDDEN), prow(base + 7, HIDDEN))

    # ---- [MASK] gather as an exact f32 block-diagonal segment-sum matmul ----
    is_mask = (ids == MASK_TOKEN_ID).astype(f32)                      # [N, 1]
    rb = jax.lax.broadcasted_iota(jnp.int32, (BATCH, N), 0)
    cn = jax.lax.broadcasted_iota(jnp.int32, (BATCH, N), 1)
    seg = jnp.where(rb == (cn >> LOG2_SEQ), 1.0, 0.0)                 # [B, N]
    mvec = jnp.dot(seg, x * is_mask, preferred_element_type=f32)      # [B, H]

    # ---- classifier + BCE-with-logits (dropout = identity in eval) ----
    z = (jnp.sum(mvec * prow(ROW_CLS_W, HIDDEN), axis=-1, keepdims=True)
         + prow(ROW_CLS_B, 1))                                        # [B, 1]
    y = y_ref[...]
    per = jnp.maximum(z, 0.0) - z * y + jnp.log(1.0 + jnp.exp(-jnp.abs(z)))
    loss = jnp.sum(per, axis=0, keepdims=True) * (1.0 / BATCH)        # [1, 1]

    # single lane-dense output block: [b,0:H]=mvec, [b,H]=logit, [0,H+1]=loss
    out_ref[...] = jnp.zeros_like(out_ref)
    out_ref[0:BATCH, 0:HIDDEN] = mvec
    out_ref[0:BATCH, OUT_LOGIT_COL:OUT_LOGIT_COL + 1] = z
    out_ref[0:1, OUT_LOSS_COL:OUT_LOSS_COL + 1] = loss


# ------------------------------- wrapper --------------------------------------
@jax.jit
def _forward_impl(ops, input_ids, token_type_ids, attention_mask, labels_arr):
    B, S = input_ids.shape
    N = B * S
    # Only free reshapes here; all mask/bias/one-hot construction is in-kernel.
    ids_col = input_ids.reshape(N, 1).astype(jnp.int32)
    tt_col = token_type_ids.reshape(N, 1).astype(jnp.int32)
    key_row = attention_mask.reshape(1, N).astype(jnp.int32)

    out = pl.pallas_call(
        fused_forward_kernel,
        out_shape=jax.ShapeDtypeStruct((8, 128), jnp.float32),
    )(ids_col, tt_col, key_row, labels_arr,
      ops['ftab'], ops['wqkv'], ops['wo'], ops['w1'], ops['w2'])

    mvec = out[0:B, 0:HIDDEN]
    logits = out[0:B, OUT_LOGIT_COL]
    loss = out[0, OUT_LOSS_COL]
    return loss, logits, mvec


def forward(ops, input_ids, token_type_ids, attention_mask, labels=None):
    B = input_ids.shape[0]
    if labels is None:
        labels_arr = jnp.zeros((B, 1), jnp.float32)
    else:
        labels_arr = labels.reshape(-1, 1).astype(jnp.float32)
    loss, logits, mvec = _forward_impl(ops, input_ids, token_type_ids,
                                       attention_mask, labels_arr)
    return (loss if labels is not None else None), logits, mvec


# ------------------------------ pure-JAX reference ---------------------------
def ref_forward(params, input_ids, token_type_ids, attention_mask, labels):
    B, S = input_ids.shape
    f32 = jnp.float32
    x = (params['word_emb'][input_ids] + params['type_emb'][token_type_ids]
         + params['pos_emb'][None, :S, :])
    x = _layer_norm(x, params['emb_g'], params['emb_b'])
    bias = (1.0 - attention_mask.astype(f32))[:, None, None, :] * NEG_INF
    for l in range(NUM_LAYERS):
        q = x @ params['wq'][l] + params['bq'][l]
        k = x @ params['wk'][l] + params['bk'][l]
        v = x @ params['wv'][l] + params['bv'][l]

        def split(t):
            return t.reshape(B, S, NUM_HEADS, HEAD_DIM).transpose(0, 2, 1, 3)

        q, k, v = split(q), split(k), split(v)
        s = jnp.einsum('bhqd,bhkd->bhqk', q, k) / math.sqrt(HEAD_DIM) + bias
        s = s - jnp.max(s, axis=-1, keepdims=True)
        p = jnp.exp(s)
        p = p / jnp.sum(p, axis=-1, keepdims=True)
        ctx = jnp.einsum('bhqk,bhkd->bhqd', p, v)
        ctx = ctx.transpose(0, 2, 1, 3).reshape(B, S, HIDDEN)
        attn = ctx @ params['wo'][l] + params['bo'][l]
        h1 = _layer_norm(x + attn, params['g1'][l], params['beta1'][l])
        f = _gelu(h1 @ params['w1'][l] + params['b1'][l])
        f = f @ params['w2'][l] + params['b2'][l]
        x = _layer_norm(h1 + f, params['g2'][l], params['beta2'][l])
    onehot = (input_ids == MASK_TOKEN_ID).astype(f32)
    mvec = jnp.einsum('bs,bsh->bh', onehot, x)
    z = jnp.sum(mvec * params['cls_w'], axis=-1) + params['cls_b'][0, 0]
    y = labels.reshape(-1).astype(f32)
    per = jnp.maximum(z, 0.0) - z * y + jnp.log(1.0 + jnp.exp(-jnp.abs(z)))
    return jnp.mean(per), z, mvec


# --------------------------------- params ------------------------------------
def init_params(key):
    ks = iter(jax.random.split(key, 64))

    def w(shape, scale=0.02):
        return jax.random.normal(next(ks), shape, jnp.float32) * scale

    def bf16_round(a):           # kernel feeds the MXU in bf16; keep ref identical
        return a.astype(jnp.bfloat16).astype(jnp.float32)

    params = {
        'word_emb': bf16_round(w((VOCAB, HIDDEN))),
        'type_emb': bf16_round(w((2, HIDDEN))),
        'pos_emb': bf16_round(w((SEQ, HIDDEN))),
        'emb_g': 1.0 + w((1, HIDDEN)),
        'emb_b': w((1, HIDDEN)),
        'cls_w': w((1, HIDDEN)),
        'cls_b': w((1, 1)),
    }
    per_layer = {k: [] for k in ('wq', 'wk', 'wv', 'wo', 'bq', 'bk', 'bv', 'bo',
                                 'g1', 'beta1', 'w1', 'b1', 'w2', 'b2', 'g2', 'beta2')}
    for _ in range(NUM_LAYERS):
        per_layer['wq'].append(bf16_round(w((HIDDEN, HIDDEN))))
        per_layer['wk'].append(bf16_round(w((HIDDEN, HIDDEN))))
        per_layer['wv'].append(bf16_round(w((HIDDEN, HIDDEN))))
        per_layer['wo'].append(bf16_round(w((HIDDEN, HIDDEN))))
        per_layer['bq'].append(w((1, HIDDEN)))
        per_layer['bk'].append(w((1, HIDDEN)))
        per_layer['bv'].append(w((1, HIDDEN)))
        per_layer['bo'].append(w((1, HIDDEN)))
        per_layer['g1'].append(1.0 + w((1, HIDDEN)))
        per_layer['beta1'].append(w((1, HIDDEN)))
        per_layer['w1'].append(bf16_round(w((HIDDEN, FFN))))
        per_layer['b1'].append(w((1, FFN)))
        per_layer['w2'].append(bf16_round(w((FFN, HIDDEN))))
        per_layer['b2'].append(w((1, HIDDEN)))
        per_layer['g2'].append(1.0 + w((1, HIDDEN)))
        per_layer['beta2'].append(w((1, HIDDEN)))
    for k, v in per_layer.items():
        params[k] = jnp.stack(v, axis=0)
    return params


def pack_operands(params):
    """Pack params into the kernel's consolidated operands (1 f32 table + 4 bf16 slabs)."""
    ftab = np.zeros((FTAB_ROWS, 128), np.float32)
    ftab[0:VOCAB, 0:HIDDEN] = np.asarray(params['word_emb'])
    ftab[VOCAB:VOCAB + 2, 0:HIDDEN] = np.asarray(params['type_emb'])
    ftab[VOCAB + 2:VOCAB + 2 + SEQ, 0:HIDDEN] = np.asarray(params['pos_emb'])
    ftab[ROW_EMB_G, 0:HIDDEN] = np.asarray(params['emb_g'])[0]
    ftab[ROW_EMB_B, 0:HIDDEN] = np.asarray(params['emb_b'])[0]
    for l in range(NUM_LAYERS):
        base = ROW_LAYER0 + l * LAYER_ROWS
        ftab[base + 0, 0:3 * HIDDEN] = np.concatenate(
            [np.asarray(params['bq'][l])[0], np.asarray(params['bk'][l])[0],
             np.asarray(params['bv'][l])[0]])
        ftab[base + 1, 0:HIDDEN] = np.asarray(params['bo'][l])[0]
        ftab[base + 2, 0:HIDDEN] = np.asarray(params['g1'][l])[0]
        ftab[base + 3, 0:HIDDEN] = np.asarray(params['beta1'][l])[0]
        ftab[base + 4, 0:FFN] = np.asarray(params['b1'][l])[0]
        ftab[base + 5, 0:HIDDEN] = np.asarray(params['b2'][l])[0]
        ftab[base + 6, 0:HIDDEN] = np.asarray(params['g2'][l])[0]
        ftab[base + 7, 0:HIDDEN] = np.asarray(params['beta2'][l])[0]
    ftab[ROW_CLS_W, 0:HIDDEN] = np.asarray(params['cls_w'])[0]
    ftab[ROW_CLS_B, 0] = np.asarray(params['cls_b'])[0, 0]

    return {
        'ftab': jnp.asarray(ftab),
        'wqkv': jnp.concatenate([params['wq'], params['wk'], params['wv']],
                                axis=2).astype(jnp.bfloat16),      # [L, H, 3H]
        'wo': params['wo'].astype(jnp.bfloat16),                   # [L, H, H]
        'w1': params['w1'].astype(jnp.bfloat16),                   # [L, H, FFN]
        'w2': params['w2'].astype(jnp.bfloat16),                   # [L, FFN, H]
    }


# ----------------------------------- main -------------------------------------
if __name__ == "__main__":
    key = jax.random.PRNGKey(0)
    k_ids, k_pos, k_lab, k_par = jax.random.split(key, 4)

    input_ids = jax.random.randint(k_ids, (BATCH, SEQ), 0, 100).astype(jnp.int32)
    mask_pos = jax.random.randint(k_pos, (BATCH,), 1, SEQ - 1)        # one [MASK]/seq
    input_ids = input_ids.at[jnp.arange(BATCH), mask_pos].set(MASK_TOKEN_ID)
    token_type_ids = jnp.concatenate(
        [jnp.zeros((BATCH, SEQ // 2), jnp.int32),
         jnp.ones((BATCH, SEQ - SEQ // 2), jnp.int32)], axis=1)
    attention_mask = jnp.ones((BATCH, SEQ), jnp.int32).at[BATCH // 2:, -1].set(0)
    labels = jax.random.bernoulli(k_lab, 0.5, (BATCH,)).astype(jnp.float32)

    params = init_params(k_par)
    ops = pack_operands(params)

    loss, logits, mvec = forward(ops, input_ids, token_type_ids,
                                 attention_mask, labels)
    jax.block_until_ready((loss, logits, mvec))

    rloss, rlogits, rmvec = ref_forward(params, input_ids, token_type_ids,
                                        attention_mask, labels)
    assert logits.shape == (BATCH,) and mvec.shape == (BATCH, HIDDEN)
    assert np.allclose(np.asarray(mvec), np.asarray(rmvec), atol=1e-2, rtol=1e-2)
    assert np.allclose(np.asarray(logits), np.asarray(rlogits), atol=1e-2, rtol=1e-2)
    assert np.allclose(float(loss), float(rloss), atol=1e-2, rtol=1e-2)

    print("KERNEL_OK")
</pallas_src>

<mosaic_0001>
module attributes {stable_mosaic.version = 11 : i64} {
  func.func @fused_forward_kernel(%arg0: memref<32x1xi32, #tpu.memory_space<vmem>>, %arg1: memref<32x1xi32, #tpu.memory_space<vmem>>, %arg2: memref<1x32xi32, #tpu.memory_space<vmem>>, %arg3: memref<4x1xf32, #tpu.memory_space<vmem>>, %arg4: memref<184x128xf32, #tpu.memory_space<vmem>>, %arg5: memref<2x32x96xbf16, #tpu.memory_space<vmem>>, %arg6: memref<2x32x32xbf16, #tpu.memory_space<vmem>>, %arg7: memref<2x32x64xbf16, #tpu.memory_space<vmem>>, %arg8: memref<2x64x32xbf16, #tpu.memory_space<vmem>>, %arg9: memref<8x128xf32, #tpu.memory_space<vmem>>) attributes {dimension_semantics = [], scalar_prefetch = 0 : i64, scratch_operands = 0 : i64, tpu.core_type = #tpu.core_type<tc>} {
    %c0 = arith.constant 0 : index
    %c0_0 = arith.constant 0 : index
    %0 = vector.load %arg0[%c0, %c0_0] : memref<32x1xi32, #tpu.memory_space<vmem>>, vector<32x1xi32>
    %c0_1 = arith.constant 0 : index
    %c0_2 = arith.constant 0 : index
    %1 = vector.load %arg1[%c0_1, %c0_2] : memref<32x1xi32, #tpu.memory_space<vmem>>, vector<32x1xi32>
    %2 = tpu.iota {dimensions = array<i32: 1>} : vector<32x160xi32>
    %3 = tpu.iota {dimensions = array<i32: 0>} : vector<32x160xi32>
    %c7_i32 = arith.constant 7 : i32
    %4 = vector.broadcast %c7_i32 : i32 to vector<32x160xi32>
    %5 = arith.andi %3, %4 : vector<32x160xi32>
    %6 = vector.broadcast %0 : vector<32x1xi32> to vector<32x160xi32>
    %7 = arith.cmpi eq, %2, %6 : vector<32x160xi32>
    %c128_i32 = arith.constant 128 : i32
    %8 = vector.broadcast %c128_i32 : i32 to vector<32x1xi32>
    %9 = arith.addi %8, %1 : vector<32x1xi32>
    %10 = vector.broadcast %9 : vector<32x1xi32> to vector<32x160xi32>
    %11 = arith.cmpi eq, %2, %10 : vector<32x160xi32>
    %12 = arith.ori %7, %11 : vector<32x160xi1>
    %c130_i32 = arith.constant 130 : i32
    %13 = vector.broadcast %c130_i32 : i32 to vector<32x160xi32>
    %14 = arith.addi %13, %5 : vector<32x160xi32>
    %15 = arith.cmpi eq, %2, %14 : vector<32x160xi32>
    %16 = arith.ori %12, %15 : vector<32x160xi1>
    %cst = arith.constant 1.000000e+00 : f32
    %cst_3 = arith.constant 0.000000e+00 : f32
    %17 = vector.broadcast %cst : f32 to vector<32x160xf32>
    %18 = vector.broadcast %cst_3 : f32 to vector<32x160xf32>
    %19 = arith.select %16, %17, %18 : vector<32x160xi1>, vector<32x160xf32>
    %20 = arith.truncf %19 : vector<32x160xf32> to vector<32x160xbf16>
    %c0_4 = arith.constant 0 : index
    %c0_5 = arith.constant 0 : index
    %21 = vector.load %arg4[%c0_4, %c0_5] : memref<184x128xf32, #tpu.memory_space<vmem>>, vector<160x32xf32>
    %22 = arith.truncf %21 : vector<160x32xf32> to vector<160x32xbf16>
    %cst_6 = arith.constant dense<0.000000e+00> : vector<32x32xf32>
    %23 = tpu.matmul %20, %22, %cst_6 {dimension_numbers = #tpu.dot_dimension_numbers<[1], [0], [0], [1], [0, 0, 1, 1], [], []>} : vector<32x160xbf16>, vector<160x32xbf16>, vector<32x32xf32> -> vector<32x32xf32>
    %c160 = arith.constant 160 : index
    %c0_7 = arith.constant 0 : index
    %24 = vector.load %arg4[%c160, %c0_7] : memref<184x128xf32, #tpu.memory_space<vmem>>, vector<1x32xf32>
    %c161 = arith.constant 161 : index
    %c0_8 = arith.constant 0 : index
    %25 = vector.load %arg4[%c161, %c0_8] : memref<184x128xf32, #tpu.memory_space<vmem>>, vector<1x32xf32>
    %cst_9 = arith.constant dense<0.000000e+00> : vector<32xf32>
    %26 = vector.multi_reduction <add>, %23, %cst_9 [1] : vector<32x32xf32> to vector<32xf32>
    %27 = vector.shape_cast %26 : vector<32xf32> to vector<32x1xf32>
    %cst_10 = arith.constant 3.200000e+01 : f32
    %28 = vector.broadcast %cst_10 : f32 to vector<32x1xf32>
    %29 = arith.divf %27, %28 : vector<32x1xf32>
    %30 = vector.broadcast %29 : vector<32x1xf32> to vector<32x32xf32>
    %31 = arith.subf %23, %30 : vector<32x32xf32>
    %32 = arith.mulf %31, %31 : vector<32x32xf32>
    %cst_11 = arith.constant dense<0.000000e+00> : vector<32xf32>
    %33 = vector.multi_reduction <add>, %32, %cst_11 [1] : vector<32x32xf32> to vector<32xf32>
    %34 = vector.shape_cast %33 : vector<32xf32> to vector<32x1xf32>
    %cst_12 = arith.constant 3.200000e+01 : f32
    %35 = vector.broadcast %cst_12 : f32 to vector<32x1xf32>
    %36 = arith.divf %34, %35 : vector<32x1xf32>
    %37 = vector.broadcast %29 : vector<32x1xf32> to vector<32x32xf32>
    %38 = arith.subf %23, %37 : vector<32x32xf32>
    %cst_13 = arith.constant 9.99999996E-13 : f32
    %39 = vector.broadcast %cst_13 : f32 to vector<32x1xf32>
    %40 = arith.addf %36, %39 : vector<32x1xf32>
    %41 = math.rsqrt %40 : vector<32x1xf32>
    %42 = vector.broadcast %41 : vector<32x1xf32> to vector<32x32xf32>
    %43 = arith.mulf %38, %42 : vector<32x32xf32>
    %44 = vector.broadcast %24 : vector<1x32xf32> to vector<32x32xf32>
    %45 = arith.mulf %43, %44 : vector<32x32xf32>
    %46 = vector.broadcast %25 : vector<1x32xf32> to vector<32x32xf32>
    %47 = arith.addf %45, %46 : vector<32x32xf32>
    %48 = tpu.iota {dimensions = array<i32: 0>} : vector<32x32xi32>
    %49 = tpu.iota {dimensions = array<i32: 1>} : vector<32x32xi32>
    %c3_i32 = arith.constant 3 : i32
    %50 = vector.broadcast %c3_i32 : i32 to vector<32x32xi32>
    %51 = arith.shrsi %48, %50 : vector<32x32xi32>
    %c3_i32_14 = arith.constant 3 : i32
    %52 = vector.broadcast %c3_i32_14 : i32 to vector<32x32xi32>
    %53 = arith.shrsi %49, %52 : vector<32x32xi32>
    %54 = arith.cmpi eq, %51, %53 : vector<32x32xi32>
    %c0_15 = arith.constant 0 : index
    %c0_16 = arith.constant 0 : index
    %55 = vector.load %arg2[%c0_15, %c0_16] : memref<1x32xi32, #tpu.memory_space<vmem>>, vector<1x32xi32>
    %c0_i32 = arith.constant 0 : i32
    %56 = vector.broadcast %c0_i32 : i32 to vector<1x32xi32>
    %57 = arith.cmpi sgt, %55, %56 : vector<1x32xi32>
    %58 = vector.broadcast %57 : vector<1x32xi1> to vector<32x32xi1>
    %59 = arith.andi %54, %58 : vector<32x32xi1>
    %cst_17 = arith.constant 0.000000e+00 : f32
    %cst_18 = arith.constant -1.000000e+09 : f32
    %60 = vector.broadcast %cst_17 : f32 to vector<32x32xf32>
    %61 = vector.broadcast %cst_18 : f32 to vector<32x32xf32>
    %62 = arith.select %59, %60, %61 : vector<32x32xi1>, vector<32x32xf32>
    %63 = arith.truncf %47 : vector<32x32xf32> to vector<32x32xbf16>
    %c0_19 = arith.constant 0 : index
    %c0_20 = arith.constant 0 : index
    %c0_21 = arith.constant 0 : index
    %64 = vector.load %arg5[%c0_19, %c0_20, %c0_21] : memref<2x32x96xbf16, #tpu.memory_space<vmem>>, vector<1x32x96xbf16>
    %65 = vector.shape_cast %64 : vector<1x32x96xbf16> to vector<32x96xbf16>
    %cst_22 = arith.constant dense<0.000000e+00> : vector<32x96xf32>
    %66 = tpu.matmul %63, %65, %cst_22 {dimension_numbers = #tpu.dot_dimension_numbers<[1], [0], [0], [1], [0, 0, 1, 1], [], []>} : vector<32x32xbf16>, vector<32x96xbf16>, vector<32x96xf32> -> vector<32x96xf32>
    %c162 = arith.constant 162 : index
    %c0_23 = arith.constant 0 : index
    %67 = vector.load %arg4[%c162, %c0_23] : memref<184x128xf32, #tpu.memory_space<vmem>>, vector<1x96xf32>
    %68 = vector.broadcast %67 : vector<1x96xf32> to vector<32x96xf32>
    %69 = arith.addf %66, %68 : vector<32x96xf32>
    %70 = arith.truncf %69 : vector<32x96xf32> to vector<32x96xbf16>
    %71 = vector.extract_strided_slice %70 {offsets = [0, 0], sizes = [32, 16], strides = [1, 1]} : vector<32x96xbf16> to vector<32x16xbf16>
    %72 = vector.extract_strided_slice %70 {offsets = [0, 32], sizes = [32, 16], strides = [1, 1]} : vector<32x96xbf16> to vector<32x16xbf16>
    %73 = vector.extract_strided_slice %70 {offsets = [0, 64], sizes = [32, 16], strides = [1, 1]} : vector<32x96xbf16> to vector<32x16xbf16>
    %cst_24 = arith.constant dense<0.000000e+00> : vector<32x32xf32>
    %74 = tpu.matmul %71, %72, %cst_24 {dimension_numbers = #tpu.dot_dimension_numbers<[1], [1], [0], [0], [0, 0, 1, 0], [], []>} : vector<32x16xbf16>, vector<32x16xbf16>, vector<32x32xf32> -> vector<32x32xf32>
    %cst_25 = arith.constant 2.500000e-01 : f32
    %75 = vector.broadcast %cst_25 : f32 to vector<32x32xf32>
    %76 = arith.mulf %74, %75 : vector<32x32xf32>
    %77 = arith.addf %76, %62 : vector<32x32xf32>
    %cst_26 = arith.constant dense<0xFF800000> : vector<32xf32>
    %78 = vector.multi_reduction <maximumf>, %77, %cst_26 [1] : vector<32x32xf32> to vector<32xf32>
    %79 = vector.shape_cast %78 : vector<32xf32> to vector<32x1xf32>
    %80 = vector.broadcast %79 : vector<32x1xf32> to vector<32x32xf32>
    %81 = arith.subf %77, %80 : vector<32x32xf32>
    %82 = math.exp %81 : vector<32x32xf32>
    %cst_27 = arith.constant dense<0.000000e+00> : vector<32xf32>
    %83 = vector.multi_reduction <add>, %82, %cst_27 [1] : vector<32x32xf32> to vector<32xf32>
    %84 = vector.shape_cast %83 : vector<32xf32> to vector<32x1xf32>
    %85 = tpu.reciprocal %84 {approx = true} : vector<32x1xf32> -> vector<32x1xf32>
    %86 = vector.broadcast %85 : vector<32x1xf32> to vector<32x32xf32>
    %87 = arith.mulf %82, %86 : vector<32x32xf32>
    %88 = arith.truncf %87 : vector<32x32xf32> to vector<32x32xbf16>
    %cst_28 = arith.constant dense<0.000000e+00> : vector<32x16xf32>
    %89 = tpu.matmul %88, %73, %cst_28 {dimension_numbers = #tpu.dot_dimension_numbers<[1], [0], [0], [1], [0, 0, 1, 1], [], []>} : vector<32x32xbf16>, vector<32x16xbf16>, vector<32x16xf32> -> vector<32x16xf32>
    %90 = vector.extract_strided_slice %70 {offsets = [0, 16], sizes = [32, 16], strides = [1, 1]} : vector<32x96xbf16> to vector<32x16xbf16>
    %91 = vector.extract_strided_slice %70 {offsets = [0, 48], sizes = [32, 16], strides = [1, 1]} : vector<32x96xbf16> to vector<32x16xbf16>
    %92 = vector.extract_strided_slice %70 {offsets = [0, 80], sizes = [32, 16], strides = [1, 1]} : vector<32x96xbf16> to vector<32x16xbf16>
    %cst_29 = arith.constant dense<0.000000e+00> : vector<32x32xf32>
    %93 = tpu.matmul %90, %91, %cst_29 {dimension_numbers = #tpu.dot_dimension_numbers<[1], [1], [0], [0], [0, 0, 1, 0], [], []>} : vector<32x16xbf16>, vector<32x16xbf16>, vector<32x32xf32> -> vector<32x32xf32>
    %cst_30 = arith.constant 2.500000e-01 : f32
    %94 = vector.broadcast %cst_30 : f32 to vector<32x32xf32>
    %95 = arith.mulf %93, %94 : vector<32x32xf32>
    %96 = arith.addf %95, %62 : vector<32x32xf32>
    %cst_31 = arith.constant dense<0xFF800000> : vector<32xf32>
    %97 = vector.multi_reduction <maximumf>, %96, %cst_31 [1] : vector<32x32xf32> to vector<32xf32>
    %98 = vector.shape_cast %97 : vector<32xf32> to vector<32x1xf32>
    %99 = vector.broadcast %98 : vector<32x1xf32> to vector<32x32xf32>
    %100 = arith.subf %96, %99 : vector<32x32xf32>
    %101 = math.exp %100 : vector<32x32xf32>
    %cst_32 = arith.constant dense<0.000000e+00> : vector<32xf32>
    %102 = vector.multi_reduction <add>, %101, %cst_32 [1] : vector<32x32xf32> to vector<32xf32>
    %103 = vector.shape_cast %102 : vector<32xf32> to vector<32x1xf32>
    %104 = tpu.reciprocal %103 {approx = true} : vector<32x1xf32> -> vector<32x1xf32>
    %105 = vector.broadcast %104 : vector<32x1xf32> to vector<32x32xf32>
    %106 = arith.mulf %101, %105 : vector<32x32xf32>
    %107 = arith.truncf %106 : vector<32x32xf32> to vector<32x32xbf16>
    %cst_33 = arith.constant dense<0.000000e+00> : vector<32x16xf32>
    %108 = tpu.matmul %107, %92, %cst_33 {dimension_numbers = #tpu.dot_dimension_numbers<[1], [0], [0], [1], [0, 0, 1, 1], [], []>} : vector<32x32xbf16>, vector<32x16xbf16>, vector<32x16xf32> -> vector<32x16xf32>
    %109 = tpu.concatenate %89, %108 in 1 : vector<32x16xf32>, vector<32x16xf32> -> vector<32x32xf32>
    %110 = arith.truncf %109 : vector<32x32xf32> to vector<32x32xbf16>
    %c0_34 = arith.constant 0 : index
    %c0_35 = arith.constant 0 : index
    %c0_36 = arith.constant 0 : index
    %111 = vector.load %arg6[%c0_34, %c0_35, %c0_36] : memref<2x32x32xbf16, #tpu.memory_space<vmem>>, vector<1x32x32xbf16>
    %112 = vector.shape_cast %111 : vector<1x32x32xbf16> to vector<32x32xbf16>
    %cst_37 = arith.constant dense<0.000000e+00> : vector<32x32xf32>
    %113 = tpu.matmul %110, %112, %cst_37 {dimension_numbers = #tpu.dot_dimension_numbers<[1], [0], [0], [1], [0, 0, 1, 1], [], []>} : vector<32x32xbf16>, vector<32x32xbf16>, vector<32x32xf32> -> vector<32x32xf32>
    %c163 = arith.constant 163 : index
    %c0_38 = arith.constant 0 : index
    %114 = vector.load %arg4[%c163, %c0_38] : memref<184x128xf32, #tpu.memory_space<vmem>>, vector<1x32xf32>
    %115 = vector.broadcast %114 : vector<1x32xf32> to vector<32x32xf32>
    %116 = arith.addf %113, %115 : vector<32x32xf32>
    %117 = arith.addf %47, %116 : vector<32x32xf32>
    %c164 = arith.constant 164 : index
    %c0_39 = arith.constant 0 : index
    %118 = vector.load %arg4[%c164, %c0_39] : memref<184x128xf32, #tpu.memory_space<vmem>>, vector<1x32xf32>
    %c165 = arith.constant 165 : index
    %c0_40 = arith.constant 0 : index
    %119 = vector.load %arg4[%c165, %c0_40] : memref<184x128xf32, #tpu.memory_space<vmem>>, vector<1x32xf32>
    %cst_41 = arith.constant dense<0.000000e+00> : vector<32xf32>
    %120 = vector.multi_reduction <add>, %117, %cst_41 [1] : vector<32x32xf32> to vector<32xf32>
    %121 = vector.shape_cast %120 : vector<32xf32> to vector<32x1xf32>
    %cst_42 = arith.constant 3.200000e+01 : f32
    %122 = vector.broadcast %cst_42 : f32 to vector<32x1xf32>
    %123 = arith.divf %121, %122 : vector<32x1xf32>
    %124 = vector.broadcast %123 : vector<32x1xf32> to vector<32x32xf32>
    %125 = arith.subf %117, %124 : vector<32x32xf32>
    %126 = arith.mulf %125, %125 : vector<32x32xf32>
    %cst_43 = arith.constant dense<0.000000e+00> : vector<32xf32>
    %127 = vector.multi_reduction <add>, %126, %cst_43 [1] : vector<32x32xf32> to vector<32xf32>
    %128 = vector.shape_cast %127 : vector<32xf32> to vector<32x1xf32>
    %cst_44 = arith.constant 3.200000e+01 : f32
    %129 = vector.broadcast %cst_44 : f32 to vector<32x1xf32>
    %130 = arith.divf %128, %129 : vector<32x1xf32>
    %131 = vector.broadcast %123 : vector<32x1xf32> to vector<32x32xf32>
    %132 = arith.subf %117, %131 : vector<32x32xf32>
    %cst_45 = arith.constant 9.99999996E-13 : f32
    %133 = vector.broadcast %cst_45 : f32 to vector<32x1xf32>
    %134 = arith.addf %130, %133 : vector<32x1xf32>
    %135 = math.rsqrt %134 : vector<32x1xf32>
    %136 = vector.broadcast %135 : vector<32x1xf32> to vector<32x32xf32>
    %137 = arith.mulf %132, %136 : vector<32x32xf32>
    %138 = vector.broadcast %118 : vector<1x32xf32> to vector<32x32xf32>
    %139 = arith.mulf %137, %138 : vector<32x32xf32>
    %140 = vector.broadcast %119 : vector<1x32xf32> to vector<32x32xf32>
    %141 = arith.addf %139, %140 : vector<32x32xf32>
    %142 = arith.truncf %141 : vector<32x32xf32> to vector<32x32xbf16>
    %c0_46 = arith.constant 0 : index
    %c0_47 = arith.constant 0 : index
    %c0_48 = arith.constant 0 : index
    %143 = vector.load %arg7[%c0_46, %c0_47, %c0_48] : memref<2x32x64xbf16, #tpu.memory_space<vmem>>, vector<1x32x64xbf16>
    %144 = vector.shape_cast %143 : vector<1x32x64xbf16> to vector<32x64xbf16>
    %cst_49 = arith.constant dense<0.000000e+00> : vector<32x64xf32>
    %145 = tpu.matmul %142, %144, %cst_49 {dimension_numbers = #tpu.dot_dimension_numbers<[1], [0], [0], [1], [0, 0, 1, 1], [], []>} : vector<32x32xbf16>, vector<32x64xbf16>, vector<32x64xf32> -> vector<32x64xf32>
    %c166 = arith.constant 166 : index
    %c0_50 = arith.constant 0 : index
    %146 = vector.load %arg4[%c166, %c0_50] : memref<184x128xf32, #tpu.memory_space<vmem>>, vector<1x64xf32>
    %147 = vector.broadcast %146 : vector<1x64xf32> to vector<32x64xf32>
    %148 = arith.addf %145, %147 : vector<32x64xf32>
    %cst_51 = arith.constant 5.000000e-01 : f32
    %149 = vector.broadcast %cst_51 : f32 to vector<32x64xf32>
    %150 = arith.mulf %149, %148 : vector<32x64xf32>
    %cst_52 = arith.constant 4.471500e-02 : f32
    %151 = vector.broadcast %cst_52 : f32 to vector<32x64xf32>
    %152 = arith.mulf %151, %148 : vector<32x64xf32>
    %153 = arith.mulf %152, %148 : vector<32x64xf32>
    %154 = arith.mulf %153, %148 : vector<32x64xf32>
    %155 = arith.addf %148, %154 : vector<32x64xf32>
    %cst_53 = arith.constant 0.797884583 : f32
    %156 = vector.broadcast %cst_53 : f32 to vector<32x64xf32>
    %157 = arith.mulf %156, %155 : vector<32x64xf32>
    %158 = math.tanh %157 : vector<32x64xf32>
    %cst_54 = arith.constant 1.000000e+00 : f32
    %159 = vector.broadcast %cst_54 : f32 to vector<32x64xf32>
    %160 = arith.addf %159, %158 : vector<32x64xf32>
    %161 = arith.mulf %150, %160 : vector<32x64xf32>
    %162 = arith.truncf %161 : vector<32x64xf32> to vector<32x64xbf16>
    %c0_55 = arith.constant 0 : index
    %c0_56 = arith.constant 0 : index
    %c0_57 = arith.constant 0 : index
    %163 = vector.load %arg8[%c0_55, %c0_56, %c0_57] : memref<2x64x32xbf16, #tpu.memory_space<vmem>>, vector<1x64x32xbf16>
    %164 = vector.shape_cast %163 : vector<1x64x32xbf16> to vector<64x32xbf16>
    %cst_58 = arith.constant dense<0.000000e+00> : vector<32x32xf32>
    %165 = tpu.matmul %162, %164, %cst_58 {dimension_numbers = #tpu.dot_dimension_numbers<[1], [0], [0], [1], [0, 0, 1, 1], [], []>} : vector<32x64xbf16>, vector<64x32xbf16>, vector<32x32xf32> -> vector<32x32xf32>
    %c167 = arith.constant 167 : index
    %c0_59 = arith.constant 0 : index
    %166 = vector.load %arg4[%c167, %c0_59] : memref<184x128xf32, #tpu.memory_space<vmem>>, vector<1x32xf32>
    %167 = vector.broadcast %166 : vector<1x32xf32> to vector<32x32xf32>
    %168 = arith.addf %165, %167 : vector<32x32xf32>
    %169 = arith.addf %141, %168 : vector<32x32xf32>
    %c168 = arith.constant 168 : index
    %c0_60 = arith.constant 0 : index
    %170 = vector.load %arg4[%c168, %c0_60] : memref<184x128xf32, #tpu.memory_space<vmem>>, vector<1x32xf32>
    %c169 = arith.constant 169 : index
    %c0_61 = arith.constant 0 : index
    %171 = vector.load %arg4[%c169, %c0_61] : memref<184x128xf32, #tpu.memory_space<vmem>>, vector<1x32xf32>
    %cst_62 = arith.constant dense<0.000000e+00> : vector<32xf32>
    %172 = vector.multi_reduction <add>, %169, %cst_62 [1] : vector<32x32xf32> to vector<32xf32>
    %173 = vector.shape_cast %172 : vector<32xf32> to vector<32x1xf32>
    %cst_63 = arith.constant 3.200000e+01 : f32
    %174 = vector.broadcast %cst_63 : f32 to vector<32x1xf32>
    %175 = arith.divf %173, %174 : vector<32x1xf32>
    %176 = vector.broadcast %175 : vector<32x1xf32> to vector<32x32xf32>
    %177 = arith.subf %169, %176 : vector<32x32xf32>
    %178 = arith.mulf %177, %177 : vector<32x32xf32>
    %cst_64 = arith.constant dense<0.000000e+00> : vector<32xf32>
    %179 = vector.multi_reduction <add>, %178, %cst_64 [1] : vector<32x32xf32> to vector<32xf32>
    %180 = vector.shape_cast %179 : vector<32xf32> to vector<32x1xf32>
    %cst_65 = arith.constant 3.200000e+01 : f32
    %181 = vector.broadcast %cst_65 : f32 to vector<32x1xf32>
    %182 = arith.divf %180, %181 : vector<32x1xf32>
    %183 = vector.broadcast %175 : vector<32x1xf32> to vector<32x32xf32>
    %184 = arith.subf %169, %183 : vector<32x32xf32>
    %cst_66 = arith.constant 9.99999996E-13 : f32
    %185 = vector.broadcast %cst_66 : f32 to vector<32x1xf32>
    %186 = arith.addf %182, %185 : vector<32x1xf32>
    %187 = math.rsqrt %186 : vector<32x1xf32>
    %188 = vector.broadcast %187 : vector<32x1xf32> to vector<32x32xf32>
    %189 = arith.mulf %184, %188 : vector<32x32xf32>
    %190 = vector.broadcast %170 : vector<1x32xf32> to vector<32x32xf32>
    %191 = arith.mulf %189, %190 : vector<32x32xf32>
    %192 = vector.broadcast %171 : vector<1x32xf32> to vector<32x32xf32>
    %193 = arith.addf %191, %192 : vector<32x32xf32>
    %194 = arith.truncf %193 : vector<32x32xf32> to vector<32x32xbf16>
    %c1 = arith.constant 1 : index
    %c0_67 = arith.constant 0 : index
    %c0_68 = arith.constant 0 : index
    %195 = vector.load %arg5[%c1, %c0_67, %c0_68] : memref<2x32x96xbf16, #tpu.memory_space<vmem>>, vector<1x32x96xbf16>
    %196 = vector.shape_cast %195 : vector<1x32x96xbf16> to vector<32x96xbf16>
    %cst_69 = arith.constant dense<0.000000e+00> : vector<32x96xf32>
    %197 = tpu.matmul %194, %196, %cst_69 {dimension_numbers = #tpu.dot_dimension_numbers<[1], [0], [0], [1], [0, 0, 1, 1], [], []>} : vector<32x32xbf16>, vector<32x96xbf16>, vector<32x96xf32> -> vector<32x96xf32>
    %c170 = arith.constant 170 : index
    %c0_70 = arith.constant 0 : index
    %198 = vector.load %arg4[%c170, %c0_70] : memref<184x128xf32, #tpu.memory_space<vmem>>, vector<1x96xf32>
    %199 = vector.broadcast %198 : vector<1x96xf32> to vector<32x96xf32>
    %200 = arith.addf %197, %199 : vector<32x96xf32>
    %201 = arith.truncf %200 : vector<32x96xf32> to vector<32x96xbf16>
    %202 = vector.extract_strided_slice %201 {offsets = [0, 0], sizes = [32, 16], strides = [1, 1]} : vector<32x96xbf16> to vector<32x16xbf16>
    %203 = vector.extract_strided_slice %201 {offsets = [0, 32], sizes = [32, 16], strides = [1, 1]} : vector<32x96xbf16> to vector<32x16xbf16>
    %204 = vector.extract_strided_slice %201 {offsets = [0, 64], sizes = [32, 16], strides = [1, 1]} : vector<32x96xbf16> to vector<32x16xbf16>
    %cst_71 = arith.constant dense<0.000000e+00> : vector<32x32xf32>
    %205 = tpu.matmul %202, %203, %cst_71 {dimension_numbers = #tpu.dot_dimension_numbers<[1], [1], [0], [0], [0, 0, 1, 0], [], []>} : vector<32x16xbf16>, vector<32x16xbf16>, vector<32x32xf32> -> vector<32x32xf32>
    %cst_72 = arith.constant 2.500000e-01 : f32
    %206 = vector.broadcast %cst_72 : f32 to vector<32x32xf32>
    %207 = arith.mulf %205, %206 : vector<32x32xf32>
    %208 = arith.addf %207, %62 : vector<32x32xf32>
    %cst_73 = arith.constant dense<0xFF800000> : vector<32xf32>
    %209 = vector.multi_reduction <maximumf>, %208, %cst_73 [1] : vector<32x32xf32> to vector<32xf32>
    %210 = vector.shape_cast %209 : vector<32xf32> to vector<32x1xf32>
    %211 = vector.broadcast %210 : vector<32x1xf32> to vector<32x32xf32>
    %212 = arith.subf %208, %211 : vector<32x32xf32>
    %213 = math.exp %212 : vector<32x32xf32>
    %cst_74 = arith.constant dense<0.000000e+00> : vector<32xf32>
    %214 = vector.multi_reduction <add>, %213, %cst_74 [1] : vector<32x32xf32> to vector<32xf32>
    %215 = vector.shape_cast %214 : vector<32xf32> to vector<32x1xf32>
    %216 = tpu.reciprocal %215 {approx = true} : vector<32x1xf32> -> vector<32x1xf32>
    %217 = vector.broadcast %216 : vector<32x1xf32> to vector<32x32xf32>
    %218 = arith.mulf %213, %217 : vector<32x32xf32>
    %219 = arith.truncf %218 : vector<32x32xf32> to vector<32x32xbf16>
    %cst_75 = arith.constant dense<0.000000e+00> : vector<32x16xf32>
    %220 = tpu.matmul %219, %204, %cst_75 {dimension_numbers = #tpu.dot_dimension_numbers<[1], [0], [0], [1], [0, 0, 1, 1], [], []>} : vector<32x32xbf16>, vector<32x16xbf16>, vector<32x16xf32> -> vector<32x16xf32>
    %221 = vector.extract_strided_slice %201 {offsets = [0, 16], sizes = [32, 16], strides = [1, 1]} : vector<32x96xbf16> to vector<32x16xbf16>
    %222 = vector.extract_strided_slice %201 {offsets = [0, 48], sizes = [32, 16], strides = [1, 1]} : vector<32x96xbf16> to vector<32x16xbf16>
    %223 = vector.extract_strided_slice %201 {offsets = [0, 80], sizes = [32, 16], strides = [1, 1]} : vector<32x96xbf16> to vector<32x16xbf16>
    %cst_76 = arith.constant dense<0.000000e+00> : vector<32x32xf32>
    %224 = tpu.matmul %221, %222, %cst_76 {dimension_numbers = #tpu.dot_dimension_numbers<[1], [1], [0], [0], [0, 0, 1, 0], [], []>} : vector<32x16xbf16>, vector<32x16xbf16>, vector<32x32xf32> -> vector<32x32xf32>
    %cst_77 = arith.constant 2.500000e-01 : f32
    %225 = vector.broadcast %cst_77 : f32 to vector<32x32xf32>
    %226 = arith.mulf %224, %225 : vector<32x32xf32>
    %227 = arith.addf %226, %62 : vector<32x32xf32>
    %cst_78 = arith.constant dense<0xFF800000> : vector<32xf32>
    %228 = vector.multi_reduction <maximumf>, %227, %cst_78 [1] : vector<32x32xf32> to vector<32xf32>
    %229 = vector.shape_cast %228 : vector<32xf32> to vector<32x1xf32>
    %230 = vector.broadcast %229 : vector<32x1xf32> to vector<32x32xf32>
    %231 = arith.subf %227, %230 : vector<32x32xf32>
    %232 = math.exp %231 : vector<32x32xf32>
    %cst_79 = arith.constant dense<0.000000e+00> : vector<32xf32>
    %233 = vector.multi_reduction <add>, %232, %cst_79 [1] : vector<32x32xf32> to vector<32xf32>
    %234 = vector.shape_cast %233 : vector<32xf32> to vector<32x1xf32>
    %235 = tpu.reciprocal %234 {approx = true} : vector<32x1xf32> -> vector<32x1xf32>
    %236 = vector.broadcast %235 : vector<32x1xf32> to vector<32x32xf32>
    %237 = arith.mulf %232, %236 : vector<32x32xf32>
    %238 = arith.truncf %237 : vector<32x32xf32> to vector<32x32xbf16>
    %cst_80 = arith.constant dense<0.000000e+00> : vector<32x16xf32>
    %239 = tpu.matmul %238, %223, %cst_80 {dimension_numbers = #tpu.dot_dimension_numbers<[1], [0], [0], [1], [0, 0, 1, 1], [], []>} : vector<32x32xbf16>, vector<32x16xbf16>, vector<32x16xf32> -> vector<32x16xf32>
    %240 = tpu.concatenate %220, %239 in 1 : vector<32x16xf32>, vector<32x16xf32> -> vector<32x32xf32>
    %241 = arith.truncf %240 : vector<32x32xf32> to vector<32x32xbf16>
    %c1_81 = arith.constant 1 : index
    %c0_82 = arith.constant 0 : index
    %c0_83 = arith.constant 0 : index
    %242 = vector.load %arg6[%c1_81, %c0_82, %c0_83] : memref<2x32x32xbf16, #tpu.memory_space<vmem>>, vector<1x32x32xbf16>
    %243 = vector.shape_cast %242 : vector<1x32x32xbf16> to vector<32x32xbf16>
    %cst_84 = arith.constant dense<0.000000e+00> : vector<32x32xf32>
    %244 = tpu.matmul %241, %243, %cst_84 {dimension_numbers = #tpu.dot_dimension_numbers<[1], [0], [0], [1], [0, 0, 1, 1], [], []>} : vector<32x32xbf16>, vector<32x32xbf16>, vector<32x32xf32> -> vector<32x32xf32>
    %c171 = arith.constant 171 : index
    %c0_85 = arith.constant 0 : index
    %245 = vector.load %arg4[%c171, %c0_85] : memref<184x128xf32, #tpu.memory_space<vmem>>, vector<1x32xf32>
    %246 = vector.broadcast %245 : vector<1x32xf32> to vector<32x32xf32>
    %247 = arith.addf %244, %246 : vector<32x32xf32>
    %248 = arith.addf %193, %247 : vector<32x32xf32>
    %c172 = arith.constant 172 : index
    %c0_86 = arith.constant 0 : index
    %249 = vector.load %arg4[%c172, %c0_86] : memref<184x128xf32, #tpu.memory_space<vmem>>, vector<1x32xf32>
    %c173 = arith.constant 173 : index
    %c0_87 = arith.constant 0 : index
    %250 = vector.load %arg4[%c173, %c0_87] : memref<184x128xf32, #tpu.memory_space<vmem>>, vector<1x32xf32>
    %cst_88 = arith.constant dense<0.000000e+00> : vector<32xf32>
    %251 = vector.multi_reduction <add>, %248, %cst_88 [1] : vector<32x32xf32> to vector<32xf32>
    %252 = vector.shape_cast %251 : vector<32xf32> to vector<32x1xf32>
    %cst_89 = arith.constant 3.200000e+01 : f32
    %253 = vector.broadcast %cst_89 : f32 to vector<32x1xf32>
    %254 = arith.divf %252, %253 : vector<32x1xf32>
    %255 = vector.broadcast %254 : vector<32x1xf32> to vector<32x32xf32>
    %256 = arith.subf %248, %255 : vector<32x32xf32>
    %257 = arith.mulf %256, %256 : vector<32x32xf32>
    %cst_90 = arith.constant dense<0.000000e+00> : vector<32xf32>
    %258 = vector.multi_reduction <add>, %257, %cst_90 [1] : vector<32x32xf32> to vector<32xf32>
    %259 = vector.shape_cast %258 : vector<32xf32> to vector<32x1xf32>
    %cst_91 = arith.constant 3.200000e+01 : f32
    %260 = vector.broadcast %cst_91 : f32 to vector<32x1xf32>
    %261 = arith.divf %259, %260 : vector<32x1xf32>
    %262 = vector.broadcast %254 : vector<32x1xf32> to vector<32x32xf32>
    %263 = arith.subf %248, %262 : vector<32x32xf32>
    %cst_92 = arith.constant 9.99999996E-13 : f32
    %264 = vector.broadcast %cst_92 : f32 to vector<32x1xf32>
    %265 = arith.addf %261, %264 : vector<32x1xf32>
    %266 = math.rsqrt %265 : vector<32x1xf32>
    %267 = vector.broadcast %266 : vector<32x1xf32> to vector<32x32xf32>
    %268 = arith.mulf %263, %267 : vector<32x32xf32>
    %269 = vector.broadcast %249 : vector<1x32xf32> to vector<32x32xf32>
    %270 = arith.mulf %268, %269 : vector<32x32xf32>
    %271 = vector.broadcast %250 : vector<1x32xf32> to vector<32x32xf32>
    %272 = arith.addf %270, %271 : vector<32x32xf32>
    %273 = arith.truncf %272 : vector<32x32xf32> to vector<32x32xbf16>
    %c1_93 = arith.constant 1 : index
    %c0_94 = arith.constant 0 : index
    %c0_95 = arith.constant 0 : index
    %274 = vector.load %arg7[%c1_93, %c0_94, %c0_95] : memref<2x32x64xbf16, #tpu.memory_space<vmem>>, vector<1x32x64xbf16>
    %275 = vector.shape_cast %274 : vector<1x32x64xbf16> to vector<32x64xbf16>
    %cst_96 = arith.constant dense<0.000000e+00> : vector<32x64xf32>
    %276 = tpu.matmul %273, %275, %cst_96 {dimension_numbers = #tpu.dot_dimension_numbers<[1], [0], [0], [1], [0, 0, 1, 1], [], []>} : vector<32x32xbf16>, vector<32x64xbf16>, vector<32x64xf32> -> vector<32x64xf32>
    %c174 = arith.constant 174 : index
    %c0_97 = arith.constant 0 : index
    %277 = vector.load %arg4[%c174, %c0_97] : memref<184x128xf32, #tpu.memory_space<vmem>>, vector<1x64xf32>
    %278 = vector.broadcast %277 : vector<1x64xf32> to vector<32x64xf32>
    %279 = arith.addf %276, %278 : vector<32x64xf32>
    %cst_98 = arith.constant 5.000000e-01 : f32
    %280 = vector.broadcast %cst_98 : f32 to vector<32x64xf32>
    %281 = arith.mulf %280, %279 : vector<32x64xf32>
    %cst_99 = arith.constant 4.471500e-02 : f32
    %282 = vector.broadcast %cst_99 : f32 to vector<32x64xf32>
    %283 = arith.mulf %282, %279 : vector<32x64xf32>
    %284 = arith.mulf %283, %279 : vector<32x64xf32>
    %285 = arith.mulf %284, %279 : vector<32x64xf32>
    %286 = arith.addf %279, %285 : vector<32x64xf32>
    %cst_100 = arith.constant 0.797884583 : f32
    %287 = vector.broadcast %cst_100 : f32 to vector<32x64xf32>
    %288 = arith.mulf %287, %286 : vector<32x64xf32>
    %289 = math.tanh %288 : vector<32x64xf32>
    %cst_101 = arith.constant 1.000000e+00 : f32
    %290 = vector.broadcast %cst_101 : f32 to vector<32x64xf32>
    %291 = arith.addf %290, %289 : vector<32x64xf32>
    %292 = arith.mulf %281, %291 : vector<32x64xf32>
    %293 = arith.truncf %292 : vector<32x64xf32> to vector<32x64xbf16>
    %c1_102 = arith.constant 1 : index
    %c0_103 = arith.constant 0 : index
    %c0_104 = arith.constant 0 : index
    %294 = vector.load %arg8[%c1_102, %c0_103, %c0_104] : memref<2x64x32xbf16, #tpu.memory_space<vmem>>, vector<1x64x32xbf16>
    %295 = vector.shape_cast %294 : vector<1x64x32xbf16> to vector<64x32xbf16>
    %cst_105 = arith.constant dense<0.000000e+00> : vector<32x32xf32>
    %296 = tpu.matmul %293, %295, %cst_105 {dimension_numbers = #tpu.dot_dimension_numbers<[1], [0], [0], [1], [0, 0, 1, 1], [], []>} : vector<32x64xbf16>, vector<64x32xbf16>, vector<32x32xf32> -> vector<32x32xf32>
    %c175 = arith.constant 175 : index
    %c0_106 = arith.constant 0 : index
    %297 = vector.load %arg4[%c175, %c0_106] : memref<184x128xf32, #tpu.memory_space<vmem>>, vector<1x32xf32>
    %298 = vector.broadcast %297 : vector<1x32xf32> to vector<32x32xf32>
    %299 = arith.addf %296, %298 : vector<32x32xf32>
    %300 = arith.addf %272, %299 : vector<32x32xf32>
    %c176 = arith.constant 176 : index
    %c0_107 = arith.constant 0 : index
    %301 = vector.load %arg4[%c176, %c0_107] : memref<184x128xf32, #tpu.memory_space<vmem>>, vector<1x32xf32>
    %c177 = arith.constant 177 : index
    %c0_108 = arith.constant 0 : index
    %302 = vector.load %arg4[%c177, %c0_108] : memref<184x128xf32, #tpu.memory_space<vmem>>, vector<1x32xf32>
    %cst_109 = arith.constant dense<0.000000e+00> : vector<32xf32>
    %303 = vector.multi_reduction <add>, %300, %cst_109 [1] : vector<32x32xf32> to vector<32xf32>
    %304 = vector.shape_cast %303 : vector<32xf32> to vector<32x1xf32>
    %cst_110 = arith.constant 3.200000e+01 : f32
    %305 = vector.broadcast %cst_110 : f32 to vector<32x1xf32>
    %306 = arith.divf %304, %305 : vector<32x1xf32>
    %307 = vector.broadcast %306 : vector<32x1xf32> to vector<32x32xf32>
    %308 = arith.subf %300, %307 : vector<32x32xf32>
    %309 = arith.mulf %308, %308 : vector<32x32xf32>
    %cst_111 = arith.constant dense<0.000000e+00> : vector<32xf32>
    %310 = vector.multi_reduction <add>, %309, %cst_111 [1] : vector<32x32xf32> to vector<32xf32>
    %311 = vector.shape_cast %310 : vector<32xf32> to vector<32x1xf32>
    %cst_112 = arith.constant 3.200000e+01 : f32
    %312 = vector.broadcast %cst_112 : f32 to vector<32x1xf32>
    %313 = arith.divf %311, %312 : vector<32x1xf32>
    %314 = vector.broadcast %306 : vector<32x1xf32> to vector<32x32xf32>
    %315 = arith.subf %300, %314 : vector<32x32xf32>
    %cst_113 = arith.constant 9.99999996E-13 : f32
    %316 = vector.broadcast %cst_113 : f32 to vector<32x1xf32>
    %317 = arith.addf %313, %316 : vector<32x1xf32>
    %318 = math.rsqrt %317 : vector<32x1xf32>
    %319 = vector.broadcast %318 : vector<32x1xf32> to vector<32x32xf32>
    %320 = arith.mulf %315, %319 : vector<32x32xf32>
    %321 = vector.broadcast %301 : vector<1x32xf32> to vector<32x32xf32>
    %322 = arith.mulf %320, %321 : vector<32x32xf32>
    %323 = vector.broadcast %302 : vector<1x32xf32> to vector<32x32xf32>
    %324 = arith.addf %322, %323 : vector<32x32xf32>
    %c103_i32 = arith.constant 103 : i32
    %325 = vector.broadcast %c103_i32 : i32 to vector<32x1xi32>
    %326 = arith.cmpi eq, %0, %325 : vector<32x1xi32>
    %327 = arith.extui %326 : vector<32x1xi1> to vector<32x1xi32>
    %328 = arith.sitofp %327 : vector<32x1xi32> to vector<32x1xf32>
    %329 = tpu.iota {dimensions = array<i32: 0>} : vector<4x32xi32>
    %330 = tpu.iota {dimensions = array<i32: 1>} : vector<4x32xi32>
    %c3_i32_114 = arith.constant 3 : i32
    %331 = vector.broadcast %c3_i32_114 : i32 to vector<4x32xi32>
    %332 = arith.shrsi %330, %331 : vector<4x32xi32>
    %333 = arith.cmpi eq, %329, %332 : vector<4x32xi32>
    %cst_115 = arith.constant 1.000000e+00 : f32
    %cst_116 = arith.constant 0.000000e+00 : f32
    %334 = vector.broadcast %cst_115 : f32 to vector<4x32xf32>
    %335 = vector.broadcast %cst_116 : f32 to vector<4x32xf32>
    %336 = arith.select %333, %334, %335 : vector<4x32xi1>, vector<4x32xf32>
    %337 = vector.broadcast %328 : vector<32x1xf32> to vector<32x32xf32>
    %338 = arith.mulf %324, %337 : vector<32x32xf32>
    %cst_117 = arith.constant dense<0.000000e+00> : vector<4x32xf32>
    %339 = tpu.matmul %336, %338, %cst_117 {dimension_numbers = #tpu.dot_dimension_numbers<[1], [0], [0], [1], [0, 0, 1, 1], [], []>} : vector<4x32xf32>, vector<32x32xf32>, vector<4x32xf32> -> vector<4x32xf32>
    %c178 = arith.constant 178 : index
    %c0_118 = arith.constant 0 : index
    %340 = vector.load %arg4[%c178, %c0_118] : memref<184x128xf32, #tpu.memory_space<vmem>>, vector<1x32xf32>
    %341 = vector.broadcast %340 : vector<1x32xf32> to vector<4x32xf32>
    %342 = arith.mulf %339, %341 : vector<4x32xf32>
    %cst_119 = arith.constant dense<0.000000e+00> : vector<4xf32>
    %343 = vector.multi_reduction <add>, %342, %cst_119 [1] : vector<4x32xf32> to vector<4xf32>
    %344 = vector.shape_cast %343 : vector<4xf32> to vector<4x1xf32>
    %c179 = arith.constant 179 : index
    %c0_120 = arith.constant 0 : index
    %345 = vector.load %arg4[%c179, %c0_120] : memref<184x128xf32, #tpu.memory_space<vmem>>, vector<1x1xf32>
    %346 = vector.broadcast %345 : vector<1x1xf32> to vector<4x1xf32>
    %347 = arith.addf %344, %346 : vector<4x1xf32>
    %c0_121 = arith.constant 0 : index
    %c0_122 = arith.constant 0 : index
    %348 = vector.load %arg3[%c0_121, %c0_122] : memref<4x1xf32, #tpu.memory_space<vmem>>, vector<4x1xf32>
    %cst_123 = arith.constant 0.000000e+00 : f32
    %349 = vector.broadcast %cst_123 : f32 to vector<4x1xf32>
    %350 = arith.maximumf %347, %349 : vector<4x1xf32>
    %351 = arith.mulf %347, %348 : vector<4x1xf32>
    %352 = arith.subf %350, %351 : vector<4x1xf32>
    %353 = math.absf %347 : vector<4x1xf32>
    %cst_124 = arith.constant 0.000000e+00 : f32
    %354 = vector.broadcast %cst_124 : f32 to vector<4x1xf32>
    %355 = arith.subf %354, %353 : vector<4x1xf32>
    %356 = math.exp %355 : vector<4x1xf32>
    %cst_125 = arith.constant 1.000000e+00 : f32
    %357 = vector.broadcast %cst_125 : f32 to vector<4x1xf32>
    %358 = arith.addf %357, %356 : vector<4x1xf32>
    %359 = math.log %358 : vector<4x1xf32>
    %360 = arith.addf %352, %359 : vector<4x1xf32>
    %cst_126 = arith.constant dense<0.000000e+00> : vector<1xf32>
    %361 = vector.multi_reduction <add>, %360, %cst_126 [0] : vector<4x1xf32> to vector<1xf32>
    %362 = vector.shape_cast %361 : vector<1xf32> to vector<1x1xf32>
    %cst_127 = arith.constant 2.500000e-01 : f32
    %363 = vector.broadcast %cst_127 : f32 to vector<1x1xf32>
    %364 = arith.mulf %362, %363 : vector<1x1xf32>
    %cst_128 = arith.constant 0.000000e+00 : f32
    %365 = vector.broadcast %cst_128 : f32 to vector<8x128xf32>
    %c0_129 = arith.constant 0 : index
    %c0_130 = arith.constant 0 : index
    %366 = vector.load %arg9[%c0_129, %c0_130] : memref<8x128xf32, #tpu.memory_space<vmem>>, vector<8x128xf32>
    tpu.vector_store %arg9[%c0_129, %c0_130], %365 {strides = array<i32>} : memref<8x128xf32, #tpu.memory_space<vmem>>, vector<8x128xf32>,
    %c0_131 = arith.constant 0 : index
    %c0_132 = arith.constant 0 : index
    %367 = vector.load %arg9[%c0_131, %c0_132] : memref<8x128xf32, #tpu.memory_space<vmem>>, vector<4x32xf32>
    tpu.vector_store %arg9[%c0_131, %c0_132], %339 {strides = array<i32>} : memref<8x128xf32, #tpu.memory_space<vmem>>, vector<4x32xf32>,
    %c0_133 = arith.constant 0 : index
    %c32 = arith.constant 32 : index
    %368 = vector.load %arg9[%c0_133, %c32] : memref<8x128xf32, #tpu.memory_space<vmem>>, vector<4x1xf32>
    tpu.vector_store %arg9[%c0_133, %c32], %347 {strides = array<i32>} : memref<8x128xf32, #tpu.memory_space<vmem>>, vector<4x1xf32>,
    %c0_134 = arith.constant 0 : index
    %c33 = arith.constant 33 : index
    %369 = vector.load %arg9[%c0_134, %c33] : memref<8x128xf32, #tpu.memory_space<vmem>>, vector<1x1xf32>
    tpu.vector_store %arg9[%c0_134, %c33], %364 {strides = array<i32>} : memref<8x128xf32, #tpu.memory_space<vmem>>, vector<1x1xf32>,
    return
  }
}

</mosaic_0001>

<llo_original>
// kernel: _forward_impl.1
$region0: #{_forward_impl.1}
  #allocation0 [shape = 'u32[]', space=smem, size = 0x4, offset = 0x4, fixed_abs, tag = 'smem constant byte address 0x4 - core index']
  #allocation1 [shape = 'u32[72,128]{1,0:T(1,128)}', space=vmem, size = 0x9000, scoped, tag = 'internal scratch']
  %s0 = inlined_call_operand.vmem [shape: s32[32,1], index: 0, kind: input, shape index: {}]
  %s1 = inlined_call_operand.vmem [shape: s32[32,1], index: 1, kind: input, shape index: {}]
  %s2 = inlined_call_operand.vmem [shape: s32[1,32], index: 2, kind: input, shape index: {}]
  %s3 = inlined_call_operand.vmem [shape: f32[4,1], index: 3, kind: input, shape index: {}]
  %s4 = inlined_call_operand.hbm [shape: f32[184,128], index: 4, kind: input, shape index: {}]
  %s5 = inlined_call_operand.vmem [shape: bf16[2,32,96], index: 5, kind: input, shape index: {}]
  %s6 = inlined_call_operand.vmem [shape: bf16[2,32,32], index: 6, kind: input, shape index: {}]
  %s7 = inlined_call_operand.vmem [shape: bf16[2,32,64], index: 7, kind: input, shape index: {}]
  %s8 = inlined_call_operand.vmem [shape: bf16[2,64,32], index: 8, kind: input, shape index: {}]
  %s9 = inlined_call_operand.vmem [shape: f32[8,128], index: 9, kind: output, shape index: {}]
  %s10 = sld [smem:[#allocation0]]
  $region50: #{_forward_impl.1} parent=0
    _
  %s12 = ssub.s32 1, %s10
  %s13 = scalar_select 0, %s12, %s10
  $region1: #{_forward_impl.1} parent=0
    #allocation2 [shape = 'u8[94208]{0}', space=vmem, size = 0x17000, scoped, tag = 'input window, operand 4, single buffered']
    #allocation3 [shape = 's32[1]{0}', space=sflag, size = 0x4, scoped, tag = 'scoped memory for _forward_impl.1']
    %14 = vsyncpa [#allocation3], 0
    // Predicated region
    $region2: #{_forward_impl.1} parent=1 // pred_check
      _
    $region3: #{_forward_impl.1} parent=1 // pred_check_branch
      %16 = sbr.rel (0) target = $region5
    $region4: #{_forward_impl.1} parent=1 // pred_region
      _
    $region5: #{_forward_impl.1} parent=1 // pred_fallthru
      _
    // Predicated region
    $region6: #{_forward_impl.1} parent=1 // pred_check
      _
    $region7: #{_forward_impl.1} parent=1 // pred_check_branch
      %18 = sbr.rel (0) target = $region9
    $region8: #{_forward_impl.1} parent=1 // pred_region
      _
    $region9: #{_forward_impl.1} parent=1 // pred_fallthru
      _
    // Predicated region
    $region10: #{_forward_impl.1} parent=1 // pred_check
      _
    $region11: #{_forward_impl.1} parent=1 // pred_check_branch
      %20 = sbr.rel (0) target = $region13
    $region12: #{_forward_impl.1} parent=1 // pred_region
      _
    $region13: #{_forward_impl.1} parent=1 // pred_fallthru
      _
    // Predicated region
    $region14: #{_forward_impl.1} parent=1 // pred_check
      _
    $region15: #{_forward_impl.1} parent=1 // pred_check_branch
      %22 = sbr.rel (0) target = $region17
    $region16: #{_forward_impl.1} parent=1 // pred_region
      _
    $region17: #{_forward_impl.1} parent=1 // pred_fallthru
      _
    // Predicated region
    $region18: #{_forward_impl.1} parent=1 // pred_check
      _
    $region19: #{_forward_impl.1} parent=1 // pred_check_branch
      %24 = sbr.rel (0) target = $region21
    $region20: #{_forward_impl.1} parent=1 // pred_region
      %26 = vsyncadd [#allocation3], 0
      %s27 = sshll.u32 %s4, 4
      %s28 = int_to_ptr.hbm [resolvable:$true] %s27
      %s29 = sshll.u32 [#allocation2], 4
      %s30 = int_to_ptr.vmem [resolvable:$true] %s29
      %35 = dma.hbm_to_vmem [thread:$0]  %s28, 2944, %s30, [#allocation3], 128, 128, 8
    $region21: #{_forward_impl.1} parent=1 // pred_fallthru
      _
    // Predicated region
    $region22: #{_forward_impl.1} parent=1 // pred_check
      _
    $region23: #{_forward_impl.1} parent=1 // pred_check_branch
      %37 = sbr.rel (0) target = $region25
    $region24: #{_forward_impl.1} parent=1 // pred_region
      _
    $region25: #{_forward_impl.1} parent=1 // pred_fallthru
      _
    // Predicated region
    $region26: #{_forward_impl.1} parent=1 // pred_check
      _
    $region27: #{_forward_impl.1} parent=1 // pred_check_branch
      %39 = sbr.rel (0) target = $region29
    $region28: #{_forward_impl.1} parent=1 // pred_region
      _
    $region29: #{_forward_impl.1} parent=1 // pred_fallthru
      _
    // Predicated region
    $region30: #{_forward_impl.1} parent=1 // pred_check
      _
    $region31: #{_forward_impl.1} parent=1 // pred_check_branch
      %41 = sbr.rel (0) target = $region33
    $region32: #{_forward_impl.1} parent=1 // pred_region
      _
    $region33: #{_forward_impl.1} parent=1 // pred_fallthru
      _
    // Predicated region
    $region34: #{_forward_impl.1} parent=1 // pred_check
      _
    $region35: #{_forward_impl.1} parent=1 // pred_check_branch
      %43 = sbr.rel (0) target = $region37
    $region36: #{_forward_impl.1} parent=1 // pred_region
      _
    $region37: #{_forward_impl.1} parent=1 // pred_fallthru
      _
    // Predicated region
    $region38: #{_forward_impl.1} parent=1 // pred_check
      _
    $region39: #{_forward_impl.1} parent=1 // pred_check_branch
      %45 = sbr.rel (0) target = $region41
    $region40: #{_forward_impl.1} parent=1 // pred_region
      %47 = dma.done [#allocation3], 2944
    $region41: #{_forward_impl.1} parent=1 // pred_fallthru
      _
    %v49 = vld [vmem:[%s0] sm:$0xff]
    %v50 = vld [vmem:[%s0 + $0x8] sm:$0xff]
    %v51 = vld [vmem:[%s0 + $0x10] sm:$0xff]
    %v52 = vld [vmem:[%s0 + $0x18] sm:$0xff]
    %v53 = vld [vmem:[%s1] sm:$0xff]
    %v54 = vld [vmem:[%s1 + $0x8] sm:$0xff]
    %v55 = vld [vmem:[%s1 + $0x10] sm:$0xff]
    %v56 = vld [vmem:[%s1 + $0x18] sm:$0xff]
    %v57 = vlaneseq
    %v58 = vand.u32 %v57, 127
    %v59 = vadd.s32 %v58, 128
    %v60 = vlaneseq
    %v61 = vshrl.u32 %v60, 7
    %v62 = vadd.s32 %v61, 8
    %v63 = vadd.s32 %v61, 16
    %v64 = vadd.s32 %v61, 24
    %v65 = vand.u32 %v61, 7
    %v66 = vand.u32 %v62, 7
    %v67 = vand.u32 %v63, 7
    %v68 = vand.u32 %v64, 7
    %69 = vset.pattern.permute.xlu0 0
    %70 = vperm.xlu0 %69, %v49
    %v71 = vpop.permute.xlu0 %70
    %72 = vset.pattern.permute.xlu0 0
    %73 = vperm.xlu0 %72, %v50
    %v74 = vpop.permute.xlu0 %73
    %75 = vset.pattern.permute.xlu0 0
    %76 = vperm.xlu0 %75, %v51
    %v77 = vpop.permute.xlu0 %76
    %78 = vset.pattern.permute.xlu0 0
    %79 = vperm.xlu0 %78, %v52
    %v80 = vpop.permute.xlu0 %79
    %vm81 = vcmp.eq.s32.totalorder %v58, %v71
    %vm82 = vcmp.eq.s32.totalorder %v59, %v71
    %vm83 = vcmp.eq.s32.totalorder %v58, %v74
    %vm84 = vcmp.eq.s32.totalorder %v59, %v74
    %vm85 = vcmp.eq.s32.totalorder %v58, %v77
    %vm86 = vcmp.eq.s32.totalorder %v59, %v77
    %vm87 = vcmp.eq.s32.totalorder %v58, %v80
    %vm88 = vcmp.eq.s32.totalorder %v59, %v80
    %v89 = vadd.s32 %v53, 128
    %v90 = vadd.s32 %v54, 128
    %v91 = vadd.s32 %v55, 128
    %v92 = vadd.s32 %v56, 128
    %93 = vset.pattern.permute.xlu0 0
    %94 = vperm.xlu0 %93, %v89
    %v95 = vpop.permute.xlu0 %94
    %96 = vset.pattern.permute.xlu0 0
    %97 = vperm.xlu0 %96, %v90
    %v98 = vpop.permute.xlu0 %97
    %99 = vset.pattern.permute.xlu0 0
    %100 = vperm.xlu0 %99, %v91
    %v101 = vpop.permute.xlu0 %100
    %102 = vset.pattern.permute.xlu0 0
    %103 = vperm.xlu0 %102, %v92
    %v104 = vpop.permute.xlu0 %103
    %vm105 = vcmp.eq.s32.totalorder %v58, %v95
    %vm106 = vcmp.eq.s32.totalorder %v59, %v95
    %vm107 = vcmp.eq.s32.totalorder %v58, %v98
    %vm108 = vcmp.eq.s32.totalorder %v59, %v98
    %vm109 = vcmp.eq.s32.totalorder %v58, %v101
    %vm110 = vcmp.eq.s32.totalorder %v59, %v101
    %vm111 = vcmp.eq.s32.totalorder %v58, %v104
    %vm112 = vcmp.eq.s32.totalorder %v59, %v104
    %vm113 = vmor %vm81, %vm105
    %vm114 = vmor %vm82, %vm106
    %vm115 = vmor %vm83, %vm107
    %vm116 = vmor %vm84, %vm108
    %vm117 = vmor %vm85, %vm109
    %vm118 = vmor %vm86, %vm110
    %vm119 = vmor %vm87, %vm111
    %vm120 = vmor %vm88, %vm112
    %v121 = vadd.s32 %v65, 130
    %v122 = vadd.s32 %v66, 130
    %v123 = vadd.s32 %v67, 130
    %v124 = vadd.s32 %v68, 130
    %vm125 = vcmp.eq.s32.totalorder %v58, %v121
    %vm126 = vcmp.eq.s32.totalorder %v59, %v121
    %vm127 = vcmp.eq.s32.totalorder %v58, %v122
    %vm128 = vcmp.eq.s32.totalorder %v59, %v122
    %vm129 = vcmp.eq.s32.totalorder %v58, %v123
    %vm130 = vcmp.eq.s32.totalorder %v59, %v123
    %vm131 = vcmp.eq.s32.totalorder %v58, %v124
    %vm132 = vcmp.eq.s32.totalorder %v59, %v124
    %vm133 = vmor %vm113, %vm125
    %vm134 = vmor %vm114, %vm126
    %vm135 = vmor %vm115, %vm127
    %vm136 = vmor %vm116, %vm128
    %vm137 = vmor %vm117, %vm129
    %vm138 = vmor %vm118, %vm130
    %vm139 = vmor %vm119, %vm131
    %vm140 = vmor %vm120, %vm132
    %v141 = vsel %vm133, 1.0, 0.0
    %v142 = vsel %vm134, 1.0, 0.0
    %v143 = vsel %vm135, 1.0, 0.0
    %v144 = vsel %vm136, 1.0, 0.0
    %v145 = vsel %vm137, 1.0, 0.0
    %v146 = vsel %vm138, 1.0, 0.0
    %v147 = vsel %vm139, 1.0, 0.0
    %v148 = vsel %vm140, 1.0, 0.0
    %v149 = vpack.c.bf16 %v143, %v141
    %v150 = vpack.c.bf16 %v144, %v142
    %v151 = vpack.c.bf16 %v147, %v145
    %v152 = vpack.c.bf16 %v148, %v146
    %v153 = vld [vmem:[#allocation2] sm:$0xff]
    %v154 = vld [vmem:[#allocation2 + $0x8] sm:$0xff]
    %v155 = vld [vmem:[#allocation2 + $0x10] sm:$0xff]
    %v156 = vld [vmem:[#allocation2 + $0x18] sm:$0xff]
    %v157 = vld [vmem:[#allocation2 + $0x20] sm:$0xff]
    %v158 = vld [vmem:[#allocation2 + $0x28] sm:$0xff]
    %v159 = vld [vmem:[#allocation2 + $0x30] sm:$0xff]
    %v160 = vld [vmem:[#allocation2 + $0x38] sm:$0xff]
    %v161 = vld [vmem:[#allocation2 + $0x40] sm:$0xff]
    %v162 = vld [vmem:[#allocation2 + $0x48] sm:$0xff]
    %v163 = vld [vmem:[#allocation2 + $0x50] sm:$0xff]
    %v164 = vld [vmem:[#allocation2 + $0x58] sm:$0xff]
    %v165 = vld [vmem:[#allocation2 + $0x60] sm:$0xff]
    %v166 = vld [vmem:[#allocation2 + $0x68] sm:$0xff]
    %v167 = vld [vmem:[#allocation2 + $0x70] sm:$0xff]
    %v168 = vld [vmem:[#allocation2 + $0x78] sm:$0xff]
    %v169 = vld [vmem:[#allocation2 + $0x80] sm:$0xff]
    %v170 = vld [vmem:[#allocation2 + $0x88] sm:$0xff]
    %v171 = vld [vmem:[#allocation2 + $0x90] sm:$0xff]
    %v172 = vld [vmem:[#allocation2 + $0x98] sm:$0xff]
    %v173 = vpack.c.bf16 %v154, %v153
    %v174 = vpack.c.bf16 %v156, %v155
    %v175 = vpack.c.bf16 %v158, %v157
    %v176 = vpack.c.bf16 %v160, %v159
    %v177 = vpack.c.bf16 %v162, %v161
    %v178 = vpack.c.bf16 %v164, %v163
    %v179 = vpack.c.bf16 %v166, %v165
    %v180 = vpack.c.bf16 %v168, %v167
    %v181 = vpack.c.bf16 %v170, %v169
    %v182 = vpack.c.bf16 %v172, %v171
    %vm183 = vcmask 261120
    %v185 = vsel %vm183, %v150, 0
    %v188 = vsel %vm183, %v152, 0
    %190 = vmatpush.bf16.msra.mxu0 %v180
    %191 = vmatpush.bf16.msra.mxu0 %v179
    %192 = vmatpush.bf16.msra.mxu0 %v178
    %193 = vmatpush.bf16.msra.mxu0 %v177
    %194 = vmatpush.bf16.msra.mxu0 %v176
    %195 = vmatpush.bf16.msra.mxu0 %v175
    %196 = vmatpush.bf16.msra.mxu0 %v174
    %197 = vmatpush.bf16.msra.mxu0 %v173
    %198 = vmatmul.bf16.gmra.mxu0 %v149
    %v199 = vpop.f32.mrf.mxu0
    %v200 = vadd.f32 0.0, %v199
    %v201 = vpop.f32.mrf.mxu0
    %v202 = vadd.f32 0.0, %v201
    %203 = vmatmul.bf16.gmra.mxu0 %v151
    %v204 = vpop.f32.mrf.mxu0
    %v205 = vadd.f32 0.0, %v204
    %v206 = vpop.f32.mrf.mxu0
    %v207 = vadd.f32 0.0, %v206
    %208 = vdwg.mxu0
    %209 = vmatpush.bf16.msra.mxu0 0
    %210 = vmatpush.bf16.msra.mxu0 0
    %211 = vmatpush.bf16.msra.mxu0 0
    %212 = vmatpush.bf16.msra.mxu0 0
    %213 = vmatpush.bf16.msra.mxu0 0
    %214 = vmatpush.bf16.msra.mxu0 0
    %215 = vmatpush.bf16.msra.mxu0 %v182
    %216 = vmatpush.bf16.msra.mxu0 %v181
    %217 = vmatmul.bf16.gmra.mxu0 %v185
    %v218 = vpop.f32.mrf.mxu0
    %v219 = vadd.f32 %v200, %v218
    %v220 = vpop.f32.mrf.mxu0
    %v221 = vadd.f32 %v202, %v220
    %222 = vmatmul.bf16.gmra.mxu0 %v188
    %v223 = vpop.f32.mrf.mxu0
    %v224 = vadd.f32 %v205, %v223
    %v225 = vpop.f32.mrf.mxu0
    %v226 = vadd.f32 %v207, %v225
    %227 = vdwg.mxu0
    %v228 = vld [vmem:[#allocation2 + $0xa0] sm:$0x1]
    %v229 = vld [vmem:[#allocation2 + $0xa1] sm:$0x1]
    %v230 = vsel %vm183, %v219, 0.0
    %231 = vadd.xlane.f32.xlu0 %v230
    %v232 = vpop.xlane.xlu0 %231
    %v233 = vsel %vm183, %v221, 0.0
    %234 = vadd.xlane.f32.xlu0 %v233
    %v235 = vpop.xlane.xlu0 %234
    %v236 = vsel %vm183, %v224, 0.0
    %237 = vadd.xlane.f32.xlu0 %v236
    %v238 = vpop.xlane.xlu0 %237
    %v239 = vsel %vm183, %v226, 0.0
    %240 = vadd.xlane.f32.xlu0 %v239
    %v241 = vpop.xlane.xlu0 %240
    %v242 = vrcp.pop 32.0
    %v243 = vmul.f32 32.0, %v242
    %v244 = vsub.f32 1.0, %v243
    %v245 = vmul.f32 %v242, %v244
    %v246 = vadd.f32 %v242, %v245
    %vm247 = vweird.f32 %v242
    %v248 = vsel %vm247, %v242, %v246
    %v249 = vmul.f32 %v232, %v248
    %v250 = vmul.f32 %v235, %v248
    %v251 = vmul.f32 %v238, %v248
    %v252 = vmul.f32 %v241, %v248
    %v253 = vsub.f32 %v219, %v249
    %v254 = vsub.f32 %v221, %v250
    %v255 = vsub.f32 %v224, %v251
    %v256 = vsub.f32 %v226, %v252
    %v257 = vmul.f32 %v253, %v253
    %v258 = vmul.f32 %v254, %v254
    %v259 = vmul.f32 %v255, %v255
    %v260 = vmul.f32 %v256, %v256
    %v261 = vsel %vm183, %v257, 0.0
    %262 = vadd.xlane.f32.xlu0 %v261
    %v263 = vpop.xlane.xlu0 %262
    %v264 = vsel %vm183, %v258, 0.0
    %265 = vadd.xlane.f32.xlu0 %v264
    %v266 = vpop.xlane.xlu0 %265
    %v267 = vsel %vm183, %v259, 0.0
    %268 = vadd.xlane.f32.xlu0 %v267
    %v269 = vpop.xlane.xlu0 %268
    %v270 = vsel %vm183, %v260, 0.0
    %271 = vadd.xlane.f32.xlu0 %v270
    %v272 = vpop.xlane.xlu0 %271
    %v273 = vmul.f32 %v263, %v248
    %v274 = vmul.f32 %v266, %v248
    %v275 = vmul.f32 %v269, %v248
    %v276 = vmul.f32 %v272, %v248
    %v277 = vadd.f32 %v273, 1e-12
    %v278 = vadd.f32 %v274, 1e-12
    %v279 = vadd.f32 %v275, 1e-12
    %v280 = vadd.f32 %v276, 1e-12
    %v281 = vrsqrt.pop %v277
    %v282 = vmul.f32 %v281, %v277
    %v283 = vmul.f32 %v282, %v281
    %v284 = vmul.f32 0.5, %v283
    %v285 = vsub.f32 1.5, %v284
    %v286 = vmul.f32 %v281, %v285
    %vm287 = vweird.f32 %v277
    %vm288 = vweird.f32 %v281
    %vm289 = vmor %vm287, %vm288
    %v290 = vsel %vm289, %v281, %v286
    %v291 = vrsqrt.pop %v278
    %v292 = vmul.f32 %v291, %v278
    %v293 = vmul.f32 %v292, %v291
    %v294 = vmul.f32 0.5, %v293
    %v295 = vsub.f32 1.5, %v294
    %v296 = vmul.f32 %v291, %v295
    %vm297 = vweird.f32 %v278
    %vm298 = vweird.f32 %v291
    %vm299 = vmor %vm297, %vm298
    %v300 = vsel %vm299, %v291, %v296
    %v301 = vrsqrt.pop %v279
    %v302 = vmul.f32 %v301, %v279
    %v303 = vmul.f32 %v302, %v301
    %v304 = vmul.f32 0.5, %v303
    %v305 = vsub.f32 1.5, %v304
    %v306 = vmul.f32 %v301, %v305
    %vm307 = vweird.f32 %v279
    %vm308 = vweird.f32 %v301
    %vm309 = vmor %vm307, %vm308
    %v310 = vsel %vm309, %v301, %v306
    %v311 = vrsqrt.pop %v280
    %v312 = vmul.f32 %v311, %v280
    %v313 = vmul.f32 %v312, %v311
    %v314 = vmul.f32 0.5, %v313
    %v315 = vsub.f32 1.5, %v314
    %v316 = vmul.f32 %v311, %v315
    %vm317 = vweird.f32 %v280
    %vm318 = vweird.f32 %v311
    %vm319 = vmor %vm317, %vm318
    %v320 = vsel %vm319, %v311, %v316
    %v321 = vmul.f32 %v253, %v290
    %v322 = vmul.f32 %v254, %v300
    %v323 = vmul.f32 %v255, %v310
    %v324 = vmul.f32 %v256, %v320
    %v325 = vperm.slane %v228, 0
    %v326 = vmul.f32 %v321, %v325
    %v327 = vmul.f32 %v322, %v325
    %v328 = vmul.f32 %v323, %v325
    %v329 = vmul.f32 %v324, %v325
    %v330 = vperm.slane %v229, 0
    %v331 = vadd.f32 %v326, %v330
    %v332 = vadd.f32 %v327, %v330
    %v333 = vadd.f32 %v328, %v330
    %v334 = vadd.f32 %v329, %v330
    %v335 = vshra.s32 %v61, 3
    %v336 = vshra.s32 %v62, 3
    %v337 = vshra.s32 %v63, 3
    %v338 = vshra.s32 %v64, 3
    %v339 = vshra.s32 %v58, 3
    %vm340 = vcmp.eq.s32.totalorder %v335, %v339
    %vm341 = vcmp.eq.s32.totalorder %v336, %v339
    %vm342 = vcmp.eq.s32.totalorder %v337, %v339
    %vm343 = vcmp.eq.s32.totalorder %v338, %v339
    %v344 = vld [vmem:[%s2] sm:$0x1]
    %vm345 = vcmp.gt.s32.totalorder %v344, 0
    %v346 = vsel %vm345, 1, 0
    %v347 = vperm.slane %v346, 0
    %vm348 = vcmp.eq.s32.totalorder %v347, 1
    %vm349 = vmand %vm340, %vm348
    %vm350 = vmand %vm341, %vm348
    %vm351 = vmand %vm342, %vm348
    %vm352 = vmand %vm343, %vm348
    %v353 = vsel %vm349, 0.0, -1e+09
    %v354 = vsel %vm350, 0.0, -1e+09
    %v355 = vsel %vm351, 0.0, -1e+09
    %v356 = vsel %vm352, 0.0, -1e+09
    %v357 = vpack.c.bf16 %v332, %v331
    %v358 = vpack.c.bf16 %v334, %v333
    %v359 = vld [vmem:[%s5] sm:$0xf]
    %v360 = vld [vmem:[%s5 + $0x4] sm:$0xf]
    %v361 = vld [vmem:[%s5 + $0x8] sm:$0xf]
    %v362 = vld [vmem:[%s5 + $0xc] sm:$0xf]
    %v363 = vld [vmem:[#allocation2 + $0xa2] sm:$0x1]
    %v364 = vperm.slane %v363, 0
    %v369 = vunpack.c.l.b16 %v359
    %v370 = vunpack.c.l.b16 %v360
    %v371 = vunpack.c.l.b16 %v361
    %v372 = vunpack.c.l.b16 %v362
    %v373 = vpack.c.b16 %v370, %v369
    %v374 = vpack.c.b16 %v372, %v371
    %v378 = vsel %vm183, %v357, 0
    %v381 = vsel %vm183, %v358, 0
    %383 = vmatpush.bf16.msra.mxu0 0
    %384 = vmatpush.bf16.msra.mxu0 0
    %385 = vmatpush.bf16.msra.mxu0 0
    %386 = vmatpush.bf16.msra.mxu0 0
    %387 = vmatpush.bf16.msra.mxu0 0
    %388 = vmatpush.bf16.msra.mxu0 0
    %389 = vmatpush.bf16.msra.mxu0 %v374
    %390 = vmatpush.bf16.msra.mxu0 %v373
    %391 = vmatmul.bf16.gmra.mxu0 %v378
    %v392 = vpop.f32.mrf.mxu0
    %v393 = vadd.f32 %v364, %v392
    %v394 = vpop.f32.mrf.mxu0
    %v395 = vadd.f32 %v364, %v394
    %396 = vmatmul.bf16.gmra.mxu0 %v381
    %v397 = vpop.f32.mrf.mxu0
    %v398 = vadd.f32 %v364, %v397
    %v399 = vpop.f32.mrf.mxu0
    %v400 = vadd.f32 %v364, %v399
    %401 = vdwg.mxu0
    %v402 = vpack.c.bf16 %v393, %v393
    %v403 = vpack.c.bf16 %v395, %v395
    %v404 = vpack.c.bf16 %v398, %v398
    %v405 = vpack.c.bf16 %v400, %v400
    %v410 = vunpack.c.l.b16 %v402
    %v411 = vunpack.c.l.b16 %v403
    %v412 = vunpack.c.l.b16 %v404
    %v413 = vunpack.c.l.b16 %v405
    %v414 = vpack.c.b16 %v411, %v410
    %v415 = vpack.c.b16 %v413, %v412
    %416 = vrot.lane.b32.xlu0 %v414, 96
    %v417 = vpop.permute.xlu0 %416
    %418 = vrot.lane.b32.xlu0 %v415, 96
    %v419 = vpop.permute.xlu0 %418
    %vm420 = vcmask 130048
    %v422 = vsel %vm420, %v414, 0
    %v425 = vsel %vm420, %v415, 0
    %v428 = vsel %vm420, %v417, 0
    %v431 = vsel %vm420, %v419, 0
    %433 = vmatpush.bf16.xpose.msra.mxu0 0
    %434 = vmatpush.bf16.xpose.msra.mxu0 0
    %435 = vmatpush.bf16.xpose.msra.mxu0 0
    %436 = vmatpush.bf16.xpose.msra.mxu0 0
    %437 = vmatpush.bf16.xpose.msra.mxu0 0
    %438 = vmatpush.bf16.xpose.msra.mxu0 0
    %439 = vmatpush.bf16.xpose.msra.mxu0 %v431
    %440 = vmatpush.bf16.xpose.msra.mxu0 %v428
    %441 = vmatmul.bf16.gmra.mxu0 %v422
    %v442 = vpop.f32.mrf.mxu0
    %v443 = vadd.f32 0.0, %v442
    %v444 = vpop.f32.mrf.mxu0
    %v445 = vadd.f32 0.0, %v444
    %446 = vmatmul.bf16.gmra.mxu0 %v425
    %v447 = vpop.f32.mrf.mxu0
    %v448 = vadd.f32 0.0, %v447
    %v449 = vpop.f32.mrf.mxu0
    %v450 = vadd.f32 0.0, %v449
    %451 = vdwg.mxu0
    %v452 = vmul.f32 %v443, 0.25
    %v453 = vmul.f32 %v445, 0.25
    %v454 = vmul.f32 %v448, 0.25
    %v455 = vmul.f32 %v450, 0.25
    %v456 = vadd.f32 %v452, %v353
    %v457 = vadd.f32 %v453, %v354
    %v458 = vadd.f32 %v454, %v355
    %v459 = vadd.f32 %v455, %v356
    %v460 = vsel %vm183, %v456, -inf
    %461 = vmax.xlane.f32.xlu0 %v460
    %v462 = vpop.xlane.xlu0 %461
    %v463 = vsel %vm183, %v457, -inf
    %464 = vmax.xlane.f32.xlu0 %v463
    %v465 = vpop.xlane.xlu0 %464
    %v466 = vsel %vm183, %v458, -inf
    %467 = vmax.xlane.f32.xlu0 %v466
    %v468 = vpop.xlane.xlu0 %467
    %v469 = vsel %vm183, %v459, -inf
    %470 = vmax.xlane.f32.xlu0 %v469
    %v471 = vpop.xlane.xlu0 %470
    %v472 = vsub.f32 %v456, %v462
    %v473 = vsub.f32 %v457, %v465
    %v474 = vsub.f32 %v458, %v468
    %v475 = vsub.f32 %v459, %v471
    %v476 = vmul.f32 %v472, 1.442695
    %v477 = vpow.pop %v476
    %v478 = vmul.f32 %v473, 1.442695
    %v479 = vpow.pop %v478
    %v480 = vmul.f32 %v474, 1.442695
    %v481 = vpow.pop %v480
    %v482 = vmul.f32 %v475, 1.442695
    %v483 = vpow.pop %v482
    %v484 = vsel %vm183, %v477, 0.0
    %485 = vadd.xlane.f32.xlu0 %v484
    %v486 = vpop.xlane.xlu0 %485
    %v487 = vsel %vm183, %v479, 0.0
    %488 = vadd.xlane.f32.xlu0 %v487
    %v489 = vpop.xlane.xlu0 %488
    %v490 = vsel %vm183, %v481, 0.0
    %491 = vadd.xlane.f32.xlu0 %v490
    %v492 = vpop.xlane.xlu0 %491
    %v493 = vsel %vm183, %v483, 0.0
    %494 = vadd.xlane.f32.xlu0 %v493
    %v495 = vpop.xlane.xlu0 %494
    %v496 = vrcp.pop %v486
    %v497 = vrcp.pop %v489
    %v498 = vrcp.pop %v492
    %v499 = vrcp.pop %v495
    %v500 = vmul.f32 %v477, %v496
    %v501 = vmul.f32 %v479, %v497
    %v502 = vmul.f32 %v481, %v498
    %v503 = vmul.f32 %v483, %v499
    %v504 = vpack.c.bf16 %v501, %v500
    %v505 = vpack.c.bf16 %v503, %v502
    %506 = vrot.lane.b32.xlu0 %v414, 64
    %v507 = vpop.permute.xlu0 %506
    %508 = vrot.lane.b32.xlu0 %v415, 64
    %v509 = vpop.permute.xlu0 %508
    %v513 = vsel %vm183, %v504, 0
    %v516 = vsel %vm183, %v505, 0
    %518 = vmatpush.bf16.msra.mxu0 0
    %519 = vmatpush.bf16.msra.mxu0 0
    %520 = vmatpush.bf16.msra.mxu0 0
    %521 = vmatpush.bf16.msra.mxu0 0
    %522 = vmatpush.bf16.msra.mxu0 0
    %523 = vmatpush.bf16.msra.mxu0 0
    %524 = vmatpush.bf16.msra.mxu0 %v509
    %525 = vmatpush.bf16.msra.mxu0 %v507
    %526 = vmatmul.bf16.gmra.mxu0 %v513
    %v527 = vpop.f32.mrf.mxu0
    %v528 = vadd.f32 0.0, %v527
    %v529 = vpop.f32.mrf.mxu0
    %v530 = vadd.f32 0.0, %v529
    %531 = vmatmul.bf16.gmra.mxu0 %v516
    %v532 = vpop.f32.mrf.mxu0
    %v533 = vadd.f32 0.0, %v532
    %v534 = vpop.f32.mrf.mxu0
    %v535 = vadd.f32 0.0, %v534
    %536 = vdwg.mxu0
    %537 = vrot.lane.b32.xlu0 %v414, 112
    %v538 = vpop.permute.xlu0 %537
    %539 = vrot.lane.b32.xlu0 %v415, 112
    %v540 = vpop.permute.xlu0 %539
    %541 = vrot.lane.b32.xlu0 %v414, 80
    %v542 = vpop.permute.xlu0 %541
    %543 = vrot.lane.b32.xlu0 %v415, 80
    %v544 = vpop.permute.xlu0 %543
    %v546 = vsel %vm420, %v538, 0
    %v549 = vsel %vm420, %v540, 0
    %v552 = vsel %vm420, %v542, 0
    %v555 = vsel %vm420, %v544, 0
    %557 = vmatpush.bf16.xpose.msra.mxu0 0
    %558 = vmatpush.bf16.xpose.msra.mxu0 0
    %559 = vmatpush.bf16.xpose.msra.mxu0 0
    %560 = vmatpush.bf16.xpose.msra.mxu0 0
    %561 = vmatpush.bf16.xpose.msra.mxu0 0
    %562 = vmatpush.bf16.xpose.msra.mxu0 0
    %563 = vmatpush.bf16.xpose.msra.mxu0 %v555
    %564 = vmatpush.bf16.xpose.msra.mxu0 %v552
    %565 = vmatmul.bf16.gmra.mxu0 %v546
    %v566 = vpop.f32.mrf.mxu0
    %v567 = vadd.f32 0.0, %v566
    %v568 = vpop.f32.mrf.mxu0
    %v569 = vadd.f32 0.0, %v568
    %570 = vmatmul.bf16.gmra.mxu0 %v549
    %v571 = vpop.f32.mrf.mxu0
    %v572 = vadd.f32 0.0, %v571
    %v573 = vpop.f32.mrf.mxu0
    %v574 = vadd.f32 0.0, %v573
    %575 = vdwg.mxu0
    %v576 = vmul.f32 %v567, 0.25
    %v577 = vmul.f32 %v569, 0.25
    %v578 = vmul.f32 %v572, 0.25
    %v579 = vmul.f32 %v574, 0.25
    %v580 = vadd.f32 %v576, %v353
    %v581 = vadd.f32 %v577, %v354
    %v582 = vadd.f32 %v578, %v355
    %v583 = vadd.f32 %v579, %v356
    %v584 = vsel %vm183, %v580, -inf
    %585 = vmax.xlane.f32.xlu0 %v584
    %v586 = vpop.xlane.xlu0 %585
    %v587 = vsel %vm183, %v581, -inf
    %588 = vmax.xlane.f32.xlu0 %v587
    %v589 = vpop.xlane.xlu0 %588
    %v590 = vsel %vm183, %v582, -inf
    %591 = vmax.xlane.f32.xlu0 %v590
    %v592 = vpop.xlane.xlu0 %591
    %v593 = vsel %vm183, %v583, -inf
    %594 = vmax.xlane.f32.xlu0 %v593
    %v595 = vpop.xlane.xlu0 %594
    %v596 = vsub.f32 %v580, %v586
    %v597 = vsub.f32 %v581, %v589
    %v598 = vsub.f32 %v582, %v592
    %v599 = vsub.f32 %v583, %v595
    %v600 = vmul.f32 %v596, 1.442695
    %v601 = vpow.pop %v600
    %v602 = vmul.f32 %v597, 1.442695
    %v603 = vpow.pop %v602
    %v604 = vmul.f32 %v598, 1.442695
    %v605 = vpow.pop %v604
    %v606 = vmul.f32 %v599, 1.442695
    %v607 = vpow.pop %v606
    %v608 = vsel %vm183, %v601, 0.0
    %609 = vadd.xlane.f32.xlu0 %v608
    %v610 = vpop.xlane.xlu0 %609
    %v611 = vsel %vm183, %v603, 0.0
    %612 = vadd.xlane.f32.xlu0 %v611
    %v613 = vpop.xlane.xlu0 %612
    %v614 = vsel %vm183, %v605, 0.0
    %615 = vadd.xlane.f32.xlu0 %v614
    %v616 = vpop.xlane.xlu0 %615
    %v617 = vsel %vm183, %v607, 0.0
    %618 = vadd.xlane.f32.xlu0 %v617
    %v619 = vpop.xlane.xlu0 %618
    %v620 = vrcp.pop %v610
    %v621 = vrcp.pop %v613
    %v622 = vrcp.pop %v616
    %v623 = vrcp.pop %v619
    %v624 = vmul.f32 %v601, %v620
    %v625 = vmul.f32 %v603, %v621
    %v626 = vmul.f32 %v605, %v622
    %v627 = vmul.f32 %v607, %v623
    %v628 = vpack.c.bf16 %v625, %v624
    %v629 = vpack.c.bf16 %v627, %v626
    %630 = vrot.lane.b32.xlu0 %v414, 48
    %v631 = vpop.permute.xlu0 %630
    %632 = vrot.lane.b32.xlu0 %v415, 48
    %v633 = vpop.permute.xlu0 %632
    %v637 = vsel %vm183, %v628, 0
    %v640 = vsel %vm183, %v629, 0
    %642 = vmatpush.bf16.msra.mxu0 0
    %643 = vmatpush.bf16.msra.mxu0 0
    %644 = vmatpush.bf16.msra.mxu0 0
    %645 = vmatpush.bf16.msra.mxu0 0
    %646 = vmatpush.bf16.msra.mxu0 0
    %647 = vmatpush.bf16.msra.mxu0 0
    %648 = vmatpush.bf16.msra.mxu0 %v633
    %649 = vmatpush.bf16.msra.mxu0 %v631
    %650 = vmatmul.bf16.gmra.mxu0 %v637
    %v651 = vpop.f32.mrf.mxu0
    %v652 = vadd.f32 0.0, %v651
    %v653 = vpop.f32.mrf.mxu0
    %v654 = vadd.f32 0.0, %v653
    %655 = vmatmul.bf16.gmra.mxu0 %v640
    %v656 = vpop.f32.mrf.mxu0
    %v657 = vadd.f32 0.0, %v656
    %v658 = vpop.f32.mrf.mxu0
    %v659 = vadd.f32 0.0, %v658
    %660 = vdwg.mxu0
    %665 = vrot.lane.b32.xlu0 %v652, 16
    %v666 = vpop.permute.xlu0 %665
    %667 = vrot.lane.b32.xlu0 %v654, 16
    %v668 = vpop.permute.xlu0 %667
    %669 = vrot.lane.b32.xlu0 %v657, 16
    %v670 = vpop.permute.xlu0 %669
    %671 = vrot.lane.b32.xlu0 %v659, 16
    %v672 = vpop.permute.xlu0 %671
    %v677 = vsel %vm420, %v528, %v666
    %v678 = vsel %vm420, %v530, %v668
    %v679 = vsel %vm420, %v533, %v670
    %v680 = vsel %vm420, %v535, %v672
    %v681 = vpack.c.bf16 %v678, %v677
    %v682 = vpack.c.bf16 %v680, %v679
    %v683 = vld [vmem:[%s6] sm:$0xf]
    %v684 = vld [vmem:[%s6 + $0x4] sm:$0xf]
    %v685 = vld [vmem:[%s6 + $0x8] sm:$0xf]
    %v686 = vld [vmem:[%s6 + $0xc] sm:$0xf]
    %v687 = vld [vmem:[#allocation2 + $0xa3] sm:$0x1]
    %v688 = vperm.slane %v687, 0
    %v693 = vunpack.c.l.b16 %v683
    %v694 = vunpack.c.l.b16 %v684
    %v695 = vunpack.c.l.b16 %v685
    %v696 = vunpack.c.l.b16 %v686
    %v697 = vpack.c.b16 %v694, %v693
    %v698 = vpack.c.b16 %v696, %v695
    %v702 = vsel %vm183, %v681, 0
    %v705 = vsel %vm183, %v682, 0
    %707 = vmatpush.bf16.msra.mxu0 0
    %708 = vmatpush.bf16.msra.mxu0 0
    %709 = vmatpush.bf16.msra.mxu0 0
    %710 = vmatpush.bf16.msra.mxu0 0
    %711 = vmatpush.bf16.msra.mxu0 0
    %712 = vmatpush.bf16.msra.mxu0 0
    %713 = vmatpush.bf16.msra.mxu0 %v698
    %714 = vmatpush.bf16.msra.mxu0 %v697
    %715 = vmatmul.bf16.gmra.mxu0 %v702
    %v716 = vpop.f32.mrf.mxu0
    %v717 = vadd.f32 %v688, %v716
    %v718 = vpop.f32.mrf.mxu0
    %v719 = vadd.f32 %v688, %v718
    %720 = vmatmul.bf16.gmra.mxu0 %v705
    %v721 = vpop.f32.mrf.mxu0
    %v722 = vadd.f32 %v688, %v721
    %v723 = vpop.f32.mrf.mxu0
    %v724 = vadd.f32 %v688, %v723
    %725 = vdwg.mxu0
    %v726 = vadd.f32 %v331, %v717
    %v727 = vadd.f32 %v332, %v719
    %v728 = vadd.f32 %v333, %v722
    %v729 = vadd.f32 %v334, %v724
    %v730 = vld [vmem:[#allocation2 + $0xa4] sm:$0x1]
    %v731 = vld [vmem:[#allocation2 + $0xa5] sm:$0x1]
    %v732 = vsel %vm183, %v726, 0.0
    %733 = vadd.xlane.f32.xlu0 %v732
    %v734 = vpop.xlane.xlu0 %733
    %v735 = vsel %vm183, %v727, 0.0
    %736 = vadd.xlane.f32.xlu0 %v735
    %v737 = vpop.xlane.xlu0 %736
    %v738 = vsel %vm183, %v728, 0.0
    %739 = vadd.xlane.f32.xlu0 %v738
    %v740 = vpop.xlane.xlu0 %739
    %v741 = vsel %vm183, %v729, 0.0
    %742 = vadd.xlane.f32.xlu0 %v741
    %v743 = vpop.xlane.xlu0 %742
    %v744 = vmul.f32 %v734, %v248
    %v745 = vmul.f32 %v737, %v248
    %v746 = vmul.f32 %v740, %v248
    %v747 = vmul.f32 %v743, %v248
    %v748 = vsub.f32 %v726, %v744
    %v749 = vsub.f32 %v727, %v745
    %v750 = vsub.f32 %v728, %v746
    %v751 = vsub.f32 %v729, %v747
    %v752 = vmul.f32 %v748, %v748
    %v753 = vmul.f32 %v749, %v749
    %v754 = vmul.f32 %v750, %v750
    %v755 = vmul.f32 %v751, %v751
    %v756 = vsel %vm183, %v752, 0.0
    %757 = vadd.xlane.f32.xlu0 %v756
    %v758 = vpop.xlane.xlu0 %757
    %v759 = vsel %vm183, %v753, 0.0
    %760 = vadd.xlane.f32.xlu0 %v759
    %v761 = vpop.xlane.xlu0 %760
    %v762 = vsel %vm183, %v754, 0.0
    %763 = vadd.xlane.f32.xlu0 %v762
    %v764 = vpop.xlane.xlu0 %763
    %v765 = vsel %vm183, %v755, 0.0
    %766 = vadd.xlane.f32.xlu0 %v765
    %v767 = vpop.xlane.xlu0 %766
    %v768 = vmul.f32 %v758, %v248
    %v769 = vmul.f32 %v761, %v248
    %v770 = vmul.f32 %v764, %v248
    %v771 = vmul.f32 %v767, %v248
    %v772 = vadd.f32 %v768, 1e-12
    %v773 = vadd.f32 %v769, 1e-12
    %v774 = vadd.f32 %v770, 1e-12
    %v775 = vadd.f32 %v771, 1e-12
    %v776 = vrsqrt.pop %v772
    %v777 = vmul.f32 %v776, %v772
    %v778 = vmul.f32 %v777, %v776
    %v779 = vmul.f32 0.5, %v778
    %v780 = vsub.f32 1.5, %v779
    %v781 = vmul.f32 %v776, %v780
    %vm782 = vweird.f32 %v772
    %vm783 = vweird.f32 %v776
    %vm784 = vmor %vm782, %vm783
    %v785 = vsel %vm784, %v776, %v781
    %v786 = vrsqrt.pop %v773
    %v787 = vmul.f32 %v786, %v773
    %v788 = vmul.f32 %v787, %v786
    %v789 = vmul.f32 0.5, %v788
    %v790 = vsub.f32 1.5, %v789
    %v791 = vmul.f32 %v786, %v790
    %vm792 = vweird.f32 %v773
    %vm793 = vweird.f32 %v786
    %vm794 = vmor %vm792, %vm793
    %v795 = vsel %vm794, %v786, %v791
    %v796 = vrsqrt.pop %v774
    %v797 = vmul.f32 %v796, %v774
    %v798 = vmul.f32 %v797, %v796
    %v799 = vmul.f32 0.5, %v798
    %v800 = vsub.f32 1.5, %v799
    %v801 = vmul.f32 %v796, %v800
    %vm802 = vweird.f32 %v774
    %vm803 = vweird.f32 %v796
    %vm804 = vmor %vm802, %vm803
    %v805 = vsel %vm804, %v796, %v801
    %v806 = vrsqrt.pop %v775
    %v807 = vmul.f32 %v806, %v775
    %v808 = vmul.f32 %v807, %v806
    %v809 = vmul.f32 0.5, %v808
    %v810 = vsub.f32 1.5, %v809
    %v811 = vmul.f32 %v806, %v810
    %vm812 = vweird.f32 %v775
    %vm813 = vweird.f32 %v806
    %vm814 = vmor %vm812, %vm813
    %v815 = vsel %vm814, %v806, %v811
    %v816 = vmul.f32 %v748, %v785
    %v817 = vmul.f32 %v749, %v795
    %v818 = vmul.f32 %v750, %v805
    %v819 = vmul.f32 %v751, %v815
    %v820 = vperm.slane %v730, 0
    %v821 = vmul.f32 %v816, %v820
    %v822 = vmul.f32 %v817, %v820
    %v823 = vmul.f32 %v818, %v820
    %v824 = vmul.f32 %v819, %v820
    %v825 = vperm.slane %v731, 0
    %v826 = vadd.f32 %v821, %v825
    %v827 = vadd.f32 %v822, %v825
    %v828 = vadd.f32 %v823, %v825
    %v829 = vadd.f32 %v824, %v825
    %v830 = vpack.c.bf16 %v827, %v826
    %v831 = vpack.c.bf16 %v829, %v828
    %v832 = vld [vmem:[%s7] sm:$0xf]
    %v833 = vld [vmem:[%s7 + $0x4] sm:$0xf]
    %v834 = vld [vmem:[%s7 + $0x8] sm:$0xf]
    %v835 = vld [vmem:[%s7 + $0xc] sm:$0xf]
    %v836 = vld [vmem:[#allocation2 + $0xa6] sm:$0x1]
    %v837 = vperm.slane %v836, 0
    %v842 = vunpack.c.l.b16 %v832
    %v843 = vunpack.c.l.b16 %v833
    %v844 = vunpack.c.l.b16 %v834
    %v845 = vunpack.c.l.b16 %v835
    %v846 = vpack.c.b16 %v843, %v842
    %v847 = vpack.c.b16 %v845, %v844
    %v851 = vsel %vm183, %v830, 0
    %v854 = vsel %vm183, %v831, 0
    %856 = vmatpush.bf16.msra.mxu0 0
    %857 = vmatpush.bf16.msra.mxu0 0
    %858 = vmatpush.bf16.msra.mxu0 0
    %859 = vmatpush.bf16.msra.mxu0 0
    %860 = vmatpush.bf16.msra.mxu0 0
    %861 = vmatpush.bf16.msra.mxu0 0
    %862 = vmatpush.bf16.msra.mxu0 %v847
    %863 = vmatpush.bf16.msra.mxu0 %v846
    %864 = vmatmul.bf16.gmra.mxu0 %v851
    %v865 = vpop.f32.mrf.mxu0
    %v866 = vadd.f32 %v837, %v865
    %v867 = vpop.f32.mrf.mxu0
    %v868 = vadd.f32 %v837, %v867
    %869 = vmatmul.bf16.gmra.mxu0 %v854
    %v870 = vpop.f32.mrf.mxu0
    %v871 = vadd.f32 %v837, %v870
    %v872 = vpop.f32.mrf.mxu0
    %v873 = vadd.f32 %v837, %v872
    %874 = vdwg.mxu0
    %v875 = vmul.f32 %v866, 0.5
    %v876 = vmul.f32 %v868, 0.5
    %v877 = vmul.f32 %v871, 0.5
    %v878 = vmul.f32 %v873, 0.5
    %v879 = vmul.f32 %v866, 0.044715
    %v880 = vmul.f32 %v868, 0.044715
    %v881 = vmul.f32 %v871, 0.044715
    %v882 = vmul.f32 %v873, 0.044715
    %v883 = vmul.f32 %v879, %v866
    %v884 = vmul.f32 %v880, %v868
    %v885 = vmul.f32 %v881, %v871
    %v886 = vmul.f32 %v882, %v873
    %v887 = vmul.f32 %v883, %v866
    %v888 = vmul.f32 %v884, %v868
    %v889 = vmul.f32 %v885, %v871
    %v890 = vmul.f32 %v886, %v873
    %v891 = vadd.f32 %v866, %v887
    %v892 = vadd.f32 %v868, %v888
    %v893 = vadd.f32 %v871, %v889
    %v894 = vadd.f32 %v873, %v890
    %v895 = vmul.f32 %v891, 0.7978846
    %v896 = vmul.f32 %v892, 0.7978846
    %v897 = vmul.f32 %v893, 0.7978846
    %v898 = vmul.f32 %v894, 0.7978846
    %v899 = vtanh.pop %v895
    %v900 = vtanh.pop %v896
    %v901 = vtanh.pop %v897
    %v902 = vtanh.pop %v898
    %v903 = vadd.f32 %v899, 1.0
    %v904 = vadd.f32 %v900, 1.0
    %v905 = vadd.f32 %v901, 1.0
    %v906 = vadd.f32 %v902, 1.0
    %v907 = vmul.f32 %v875, %v903
    %v908 = vmul.f32 %v876, %v904
    %v909 = vmul.f32 %v877, %v905
    %v910 = vmul.f32 %v878, %v906
    %v911 = vpack.c.bf16 %v908, %v907
    %v912 = vpack.c.bf16 %v910, %v909
    %v913 = vld [vmem:[%s8] sm:$0xf]
    %v914 = vld [vmem:[%s8 + $0x4] sm:$0xf]
    %v915 = vld [vmem:[%s8 + $0x8] sm:$0xf]
    %v916 = vld [vmem:[%s8 + $0xc] sm:$0xf]
    %v917 = vld [vmem:[%s8 + $0x10] sm:$0xf]
    %v918 = vld [vmem:[%s8 + $0x14] sm:$0xf]
    %v919 = vld [vmem:[%s8 + $0x18] sm:$0xf]
    %v920 = vld [vmem:[%s8 + $0x1c] sm:$0xf]
    %v921 = vld [vmem:[#allocation2 + $0xa7] sm:$0x1]
    %v922 = vperm.slane %v921, 0
    %v931 = vunpack.c.l.b16 %v913
    %v932 = vunpack.c.l.b16 %v914
    %v933 = vunpack.c.l.b16 %v915
    %v934 = vunpack.c.l.b16 %v916
    %v935 = vunpack.c.l.b16 %v917
    %v936 = vunpack.c.l.b16 %v918
    %v937 = vunpack.c.l.b16 %v919
    %v938 = vunpack.c.l.b16 %v920
    %v939 = vpack.c.b16 %v932, %v931
    %v940 = vpack.c.b16 %v934, %v933
    %v941 = vpack.c.b16 %v936, %v935
    %v942 = vpack.c.b16 %v938, %v937
    %vm947 = vcmask 523264
    %v949 = vsel %vm947, %v911, 0
    %v952 = vsel %vm947, %v912, 0
    %954 = vmatpush.bf16.msra.mxu0 0
    %955 = vmatpush.bf16.msra.mxu0 0
    %956 = vmatpush.bf16.msra.mxu0 0
    %957 = vmatpush.bf16.msra.mxu0 0
    %958 = vmatpush.bf16.msra.mxu0 %v942
    %959 = vmatpush.bf16.msra.mxu0 %v941
    %960 = vmatpush.bf16.msra.mxu0 %v940
    %961 = vmatpush.bf16.msra.mxu0 %v939
    %962 = vmatmul.bf16.gmra.mxu0 %v949
    %v963 = vpop.f32.mrf.mxu0
    %v964 = vadd.f32 %v922, %v963
    %v965 = vpop.f32.mrf.mxu0
    %v966 = vadd.f32 %v922, %v965
    %967 = vmatmul.bf16.gmra.mxu0 %v952
    %v968 = vpop.f32.mrf.mxu0
    %v969 = vadd.f32 %v922, %v968
    %v970 = vpop.f32.mrf.mxu0
    %v971 = vadd.f32 %v922, %v970
    %972 = vdwg.mxu0
    %v973 = vadd.f32 %v826, %v964
    %v974 = vadd.f32 %v827, %v966
    %v975 = vadd.f32 %v828, %v969
    %v976 = vadd.f32 %v829, %v971
    %v977 = vld [vmem:[#allocation2 + $0xa8] sm:$0x1]
    %v978 = vld [vmem:[#allocation2 + $0xa9] sm:$0x1]
    %v979 = vsel %vm183, %v973, 0.0
    %980 = vadd.xlane.f32.xlu0 %v979
    %v981 = vpop.xlane.xlu0 %980
    %v982 = vsel %vm183, %v974, 0.0
    %983 = vadd.xlane.f32.xlu0 %v982
    %v984 = vpop.xlane.xlu0 %983
    %v985 = vsel %vm183, %v975, 0.0
    %986 = vadd.xlane.f32.xlu0 %v985
    %v987 = vpop.xlane.xlu0 %986
    %v988 = vsel %vm183, %v976, 0.0
    %989 = vadd.xlane.f32.xlu0 %v988
    %v990 = vpop.xlane.xlu0 %989
    %v991 = vmul.f32 %v981, %v248
    %v992 = vmul.f32 %v984, %v248
    %v993 = vmul.f32 %v987, %v248
    %v994 = vmul.f32 %v990, %v248
    %v995 = vsub.f32 %v973, %v991
    %v996 = vsub.f32 %v974, %v992
    %v997 = vsub.f32 %v975, %v993
    %v998 = vsub.f32 %v976, %v994
    %v999 = vmul.f32 %v995, %v995
    %v1000 = vmul.f32 %v996, %v996
    %v1001 = vmul.f32 %v997, %v997
    %v1002 = vmul.f32 %v998, %v998
    %v1003 = vsel %vm183, %v999, 0.0
    %1004 = vadd.xlane.f32.xlu0 %v1003
    %v1005 = vpop.xlane.xlu0 %1004
    %v1006 = vsel %vm183, %v1000, 0.0
    %1007 = vadd.xlane.f32.xlu0 %v1006
    %v1008 = vpop.xlane.xlu0 %1007
    %v1009 = vsel %vm183, %v1001, 0.0
    %1010 = vadd.xlane.f32.xlu0 %v1009
    %v1011 = vpop.xlane.xlu0 %1010
    %v1012 = vsel %vm183, %v1002, 0.0
    %1013 = vadd.xlane.f32.xlu0 %v1012
    %v1014 = vpop.xlane.xlu0 %1013
    %v1015 = vmul.f32 %v1005, %v248
    %v1016 = vmul.f32 %v1008, %v248
    %v1017 = vmul.f32 %v1011, %v248
    %v1018 = vmul.f32 %v1014, %v248
    %v1019 = vadd.f32 %v1015, 1e-12
    %v1020 = vadd.f32 %v1016, 1e-12
    %v1021 = vadd.f32 %v1017, 1e-12
    %v1022 = vadd.f32 %v1018, 1e-12
    %v1023 = vrsqrt.pop %v1019
    %v1024 = vmul.f32 %v1023, %v1019
    %v1025 = vmul.f32 %v1024, %v1023
    %v1026 = vmul.f32 0.5, %v1025
    %v1027 = vsub.f32 1.5, %v1026
    %v1028 = vmul.f32 %v1023, %v1027
    %vm1029 = vweird.f32 %v1019
    %vm1030 = vweird.f32 %v1023
    %vm1031 = vmor %vm1029, %vm1030
    %v1032 = vsel %vm1031, %v1023, %v1028
    %v1033 = vrsqrt.pop %v1020
    %v1034 = vmul.f32 %v1033, %v1020
    %v1035 = vmul.f32 %v1034, %v1033
    %v1036 = vmul.f32 0.5, %v1035
    %v1037 = vsub.f32 1.5, %v1036
    %v1038 = vmul.f32 %v1033, %v1037
    %vm1039 = vweird.f32 %v1020
    %vm1040 = vweird.f32 %v1033
    %vm1041 = vmor %vm1039, %vm1040
    %v1042 = vsel %vm1041, %v1033, %v1038
    %v1043 = vrsqrt.pop %v1021
    %v1044 = vmul.f32 %v1043, %v1021
    %v1045 = vmul.f32 %v1044, %v1043
    %v1046 = vmul.f32 0.5, %v1045
    %v1047 = vsub.f32 1.5, %v1046
    %v1048 = vmul.f32 %v1043, %v1047
    %vm1049 = vweird.f32 %v1021
    %vm1050 = vweird.f32 %v1043
    %vm1051 = vmor %vm1049, %vm1050
    %v1052 = vsel %vm1051, %v1043, %v1048
    %v1053 = vrsqrt.pop %v1022
    %v1054 = vmul.f32 %v1053, %v1022
    %v1055 = vmul.f32 %v1054, %v1053
    %v1056 = vmul.f32 0.5, %v1055
    %v1057 = vsub.f32 1.5, %v1056
    %v1058 = vmul.f32 %v1053, %v1057
    %vm1059 = vweird.f32 %v1022
    %vm1060 = vweird.f32 %v1053
    %vm1061 = vmor %vm1059, %vm1060
    %v1062 = vsel %vm1061, %v1053, %v1058
    %v1063 = vmul.f32 %v995, %v1032
    %v1064 = vmul.f32 %v996, %v1042
    %v1065 = vmul.f32 %v997, %v1052
    %v1066 = vmul.f32 %v998, %v1062
    %v1067 = vperm.slane %v977, 0
    %v1068 = vmul.f32 %v1063, %v1067
    %v1069 = vmul.f32 %v1064, %v1067
    %v1070 = vmul.f32 %v1065, %v1067
    %v1071 = vmul.f32 %v1066, %v1067
    %v1072 = vperm.slane %v978, 0
    %v1073 = vadd.f32 %v1068, %v1072
    %v1074 = vadd.f32 %v1069, %v1072
    %v1075 = vadd.f32 %v1070, %v1072
    %v1076 = vadd.f32 %v1071, %v1072
    %v1077 = vpack.c.bf16 %v1074, %v1073
    %v1078 = vpack.c.bf16 %v1076, %v1075
    %s1079 = scalar_lea.vmem %s5, 16
    %v1080 = vld [vmem:[%s1079] sm:$0xf]
    %v1081 = vld [vmem:[%s1079 + $0x4] sm:$0xf]
    %v1082 = vld [vmem:[%s1079 + $0x8] sm:$0xf]
    %v1083 = vld [vmem:[%s1079 + $0xc] sm:$0xf]
    %v1084 = vld [vmem:[#allocation2 + $0xaa] sm:$0x1]
    %v1085 = vperm.slane %v1084, 0
    %v1090 = vunpack.c.l.b16 %v1080
    %v1091 = vunpack.c.l.b16 %v1081
    %v1092 = vunpack.c.l.b16 %v1082
    %v1093 = vunpack.c.l.b16 %v1083
    %v1094 = vpack.c.b16 %v1091, %v1090
    %v1095 = vpack.c.b16 %v1093, %v1092
    %v1099 = vsel %vm183, %v1077, 0
    %v1102 = vsel %vm183, %v1078, 0
    %1104 = vmatpush.bf16.msra.mxu0 0
    %1105 = vmatpush.bf16.msra.mxu0 0
    %1106 = vmatpush.bf16.msra.mxu0 0
    %1107 = vmatpush.bf16.msra.mxu0 0
    %1108 = vmatpush.bf16.msra.mxu0 0
    %1109 = vmatpush.bf16.msra.mxu0 0
    %1110 = vmatpush.bf16.msra.mxu0 %v1095
    %1111 = vmatpush.bf16.msra.mxu0 %v1094
    %1112 = vmatmul.bf16.gmra.mxu0 %v1099
    %v1113 = vpop.f32.mrf.mxu0
    %v1114 = vadd.f32 %v1085, %v1113
    %v1115 = vpop.f32.mrf.mxu0
    %v1116 = vadd.f32 %v1085, %v1115
    %1117 = vmatmul.bf16.gmra.mxu0 %v1102
    %v1118 = vpop.f32.mrf.mxu0
    %v1119 = vadd.f32 %v1085, %v1118
    %v1120 = vpop.f32.mrf.mxu0
    %v1121 = vadd.f32 %v1085, %v1120
    %1122 = vdwg.mxu0
    %v1123 = vpack.c.bf16 %v1114, %v1114
    %v1124 = vpack.c.bf16 %v1116, %v1116
    %v1125 = vpack.c.bf16 %v1119, %v1119
    %v1126 = vpack.c.bf16 %v1121, %v1121
    %v1131 = vunpack.c.l.b16 %v1123
    %v1132 = vunpack.c.l.b16 %v1124
    %v1133 = vunpack.c.l.b16 %v1125
    %v1134 = vunpack.c.l.b16 %v1126
    %v1135 = vpack.c.b16 %v1132, %v1131
    %v1136 = vpack.c.b16 %v1134, %v1133
    %1137 = vrot.lane.b32.xlu0 %v1135, 96
    %v1138 = vpop.permute.xlu0 %1137
    %1139 = vrot.lane.b32.xlu0 %v1136, 96
    %v1140 = vpop.permute.xlu0 %1139
    %v1142 = vsel %vm420, %v1135, 0
    %v1145 = vsel %vm420, %v1136, 0
    %v1148 = vsel %vm420, %v1138, 0
    %v1151 = vsel %vm420, %v1140, 0
    %1153 = vmatpush.bf16.xpose.msra.mxu0 0
    %1154 = vmatpush.bf16.xpose.msra.mxu0 0
    %1155 = vmatpush.bf16.xpose.msra.mxu0 0
    %1156 = vmatpush.bf16.xpose.msra.mxu0 0
    %1157 = vmatpush.bf16.xpose.msra.mxu0 0
    %1158 = vmatpush.bf16.xpose.msra.mxu0 0
    %1159 = vmatpush.bf16.xpose.msra.mxu0 %v1151
    %1160 = vmatpush.bf16.xpose.msra.mxu0 %v1148
    %1161 = vmatmul.bf16.gmra.mxu0 %v1142
    %v1162 = vpop.f32.mrf.mxu0
    %v1163 = vadd.f32 0.0, %v1162
    %v1164 = vpop.f32.mrf.mxu0
    %v1165 = vadd.f32 0.0, %v1164
    %1166 = vmatmul.bf16.gmra.mxu0 %v1145
    %v1167 = vpop.f32.mrf.mxu0
    %v1168 = vadd.f32 0.0, %v1167
    %v1169 = vpop.f32.mrf.mxu0
    %v1170 = vadd.f32 0.0, %v1169
    %1171 = vdwg.mxu0
    %v1172 = vmul.f32 %v1163, 0.25
    %v1173 = vmul.f32 %v1165, 0.25
    %v1174 = vmul.f32 %v1168, 0.25
    %v1175 = vmul.f32 %v1170, 0.25
    %v1176 = vadd.f32 %v1172, %v353
    %v1177 = vadd.f32 %v1173, %v354
    %v1178 = vadd.f32 %v1174, %v355
    %v1179 = vadd.f32 %v1175, %v356
    %v1180 = vsel %vm183, %v1176, -inf
    %1181 = vmax.xlane.f32.xlu0 %v1180
    %v1182 = vpop.xlane.xlu0 %1181
    %v1183 = vsel %vm183, %v1177, -inf
    %1184 = vmax.xlane.f32.xlu0 %v1183
    %v1185 = vpop.xlane.xlu0 %1184
    %v1186 = vsel %vm183, %v1178, -inf
    %1187 = vmax.xlane.f32.xlu0 %v1186
    %v1188 = vpop.xlane.xlu0 %1187
    %v1189 = vsel %vm183, %v1179, -inf
    %1190 = vmax.xlane.f32.xlu0 %v1189
    %v1191 = vpop.xlane.xlu0 %1190
    %v1192 = vsub.f32 %v1176, %v1182
    %v1193 = vsub.f32 %v1177, %v1185
    %v1194 = vsub.f32 %v1178, %v1188
    %v1195 = vsub.f32 %v1179, %v1191
    %v1196 = vmul.f32 %v1192, 1.442695
    %v1197 = vpow.pop %v1196
    %v1198 = vmul.f32 %v1193, 1.442695
    %v1199 = vpow.pop %v1198
    %v1200 = vmul.f32 %v1194, 1.442695
    %v1201 = vpow.pop %v1200
    %v1202 = vmul.f32 %v1195, 1.442695
    %v1203 = vpow.pop %v1202
    %v1204 = vsel %vm183, %v1197, 0.0
    %1205 = vadd.xlane.f32.xlu0 %v1204
    %v1206 = vpop.xlane.xlu0 %1205
    %v1207 = vsel %vm183, %v1199, 0.0
    %1208 = vadd.xlane.f32.xlu0 %v1207
    %v1209 = vpop.xlane.xlu0 %1208
    %v1210 = vsel %vm183, %v1201, 0.0
    %1211 = vadd.xlane.f32.xlu0 %v1210
    %v1212 = vpop.xlane.xlu0 %1211
    %v1213 = vsel %vm183, %v1203, 0.0
    %1214 = vadd.xlane.f32.xlu0 %v1213
    %v1215 = vpop.xlane.xlu0 %1214
    %v1216 = vrcp.pop %v1206
    %v1217 = vrcp.pop %v1209
    %v1218 = vrcp.pop %v1212
    %v1219 = vrcp.pop %v1215
    %v1220 = vmul.f32 %v1197, %v1216
    %v1221 = vmul.f32 %v1199, %v1217
    %v1222 = vmul.f32 %v1201, %v1218
    %v1223 = vmul.f32 %v1203, %v1219
    %v1224 = vpack.c.bf16 %v1221, %v1220
    %v1225 = vpack.c.bf16 %v1223, %v1222
    %1226 = vrot.lane.b32.xlu0 %v1135, 64
    %v1227 = vpop.permute.xlu0 %1226
    %1228 = vrot.lane.b32.xlu0 %v1136, 64
    %v1229 = vpop.permute.xlu0 %1228
    %v1233 = vsel %vm183, %v1224, 0
    %v1236 = vsel %vm183, %v1225, 0
    %1238 = vmatpush.bf16.msra.mxu0 0
    %1239 = vmatpush.bf16.msra.mxu0 0
    %1240 = vmatpush.bf16.msra.mxu0 0
    %1241 = vmatpush.bf16.msra.mxu0 0
    %1242 = vmatpush.bf16.msra.mxu0 0
    %1243 = vmatpush.bf16.msra.mxu0 0
    %1244 = vmatpush.bf16.msra.mxu0 %v1229
    %1245 = vmatpush.bf16.msra.mxu0 %v1227
    %1246 = vmatmul.bf16.gmra.mxu0 %v1233
    %v1247 = vpop.f32.mrf.mxu0
    %v1248 = vadd.f32 0.0, %v1247
    %v1249 = vpop.f32.mrf.mxu0
    %v1250 = vadd.f32 0.0, %v1249
    %1251 = vmatmul.bf16.gmra.mxu0 %v1236
    %v1252 = vpop.f32.mrf.mxu0
    %v1253 = vadd.f32 0.0, %v1252
    %v1254 = vpop.f32.mrf.mxu0
    %v1255 = vadd.f32 0.0, %v1254
    %1256 = vdwg.mxu0
    %1257 = vrot.lane.b32.xlu0 %v1135, 112
    %v1258 = vpop.permute.xlu0 %1257
    %1259 = vrot.lane.b32.xlu0 %v1136, 112
    %v1260 = vpop.permute.xlu0 %1259
    %1261 = vrot.lane.b32.xlu0 %v1135, 80
    %v1262 = vpop.permute.xlu0 %1261
    %1263 = vrot.lane.b32.xlu0 %v1136, 80
    %v1264 = vpop.permute.xlu0 %1263
    %v1266 = vsel %vm420, %v1258, 0
    %v1269 = vsel %vm420, %v1260, 0
    %v1272 = vsel %vm420, %v1262, 0
    %v1275 = vsel %vm420, %v1264, 0
    %1277 = vmatpush.bf16.xpose.msra.mxu0 0
    %1278 = vmatpush.bf16.xpose.msra.mxu0 0
    %1279 = vmatpush.bf16.xpose.msra.mxu0 0
    %1280 = vmatpush.bf16.xpose.msra.mxu0 0
    %1281 = vmatpush.bf16.xpose.msra.mxu0 0
    %1282 = vmatpush.bf16.xpose.msra.mxu0 0
    %1283 = vmatpush.bf16.xpose.msra.mxu0 %v1275
    %1284 = vmatpush.bf16.xpose.msra.mxu0 %v1272
    %1285 = vmatmul.bf16.gmra.mxu0 %v1266
    %v1286 = vpop.f32.mrf.mxu0
    %v1287 = vadd.f32 0.0, %v1286
    %v1288 = vpop.f32.mrf.mxu0
    %v1289 = vadd.f32 0.0, %v1288
    %1290 = vmatmul.bf16.gmra.mxu0 %v1269
    %v1291 = vpop.f32.mrf.mxu0
    %v1292 = vadd.f32 0.0, %v1291
    %v1293 = vpop.f32.mrf.mxu0
    %v1294 = vadd.f32 0.0, %v1293
    %1295 = vdwg.mxu0
    %v1296 = vmul.f32 %v1287, 0.25
    %v1297 = vmul.f32 %v1289, 0.25
    %v1298 = vmul.f32 %v1292, 0.25
    %v1299 = vmul.f32 %v1294, 0.25
    %v1300 = vadd.f32 %v1296, %v353
    %v1301 = vadd.f32 %v1297, %v354
    %v1302 = vadd.f32 %v1298, %v355
    %v1303 = vadd.f32 %v1299, %v356
    %v1304 = vsel %vm183, %v1300, -inf
    %1305 = vmax.xlane.f32.xlu0 %v1304
    %v1306 = vpop.xlane.xlu0 %1305
    %v1307 = vsel %vm183, %v1301, -inf
    %1308 = vmax.xlane.f32.xlu0 %v1307
    %v1309 = vpop.xlane.xlu0 %1308
    %v1310 = vsel %vm183, %v1302, -inf
    %1311 = vmax.xlane.f32.xlu0 %v1310
    %v1312 = vpop.xlane.xlu0 %1311
    %v1313 = vsel %vm183, %v1303, -inf
    %1314 = vmax.xlane.f32.xlu0 %v1313
    %v1315 = vpop.xlane.xlu0 %1314
    %v1316 = vsub.f32 %v1300, %v1306
    %v1317 = vsub.f32 %v1301, %v1309
    %v1318 = vsub.f32 %v1302, %v1312
    %v1319 = vsub.f32 %v1303, %v1315
    %v1320 = vmul.f32 %v1316, 1.442695
    %v1321 = vpow.pop %v1320
    %v1322 = vmul.f32 %v1317, 1.442695
    %v1323 = vpow.pop %v1322
    %v1324 = vmul.f32 %v1318, 1.442695
    %v1325 = vpow.pop %v1324
    %v1326 = vmul.f32 %v1319, 1.442695
    %v1327 = vpow.pop %v1326
    %v1328 = vsel %vm183, %v1321, 0.0
    %1329 = vadd.xlane.f32.xlu0 %v1328
    %v1330 = vpop.xlane.xlu0 %1329
    %v1331 = vsel %vm183, %v1323, 0.0
    %1332 = vadd.xlane.f32.xlu0 %v1331
    %v1333 = vpop.xlane.xlu0 %1332
    %v1334 = vsel %vm183, %v1325, 0.0
    %1335 = vadd.xlane.f32.xlu0 %v1334
    %v1336 = vpop.xlane.xlu0 %1335
    %v1337 = vsel %vm183, %v1327, 0.0
    %1338 = vadd.xlane.f32.xlu0 %v1337
    %v1339 = vpop.xlane.xlu0 %1338
    %v1340 = vrcp.pop %v1330
    %v1341 = vrcp.pop %v1333
    %v1342 = vrcp.pop %v1336
    %v1343 = vrcp.pop %v1339
    %v1344 = vmul.f32 %v1321, %v1340
    %v1345 = vmul.f32 %v1323, %v1341
    %v1346 = vmul.f32 %v1325, %v1342
    %v1347 = vmul.f32 %v1327, %v1343
    %v1348 = vpack.c.bf16 %v1345, %v1344
    %v1349 = vpack.c.bf16 %v1347, %v1346
    %1350 = vrot.lane.b32.xlu0 %v1135, 48
    %v1351 = vpop.permute.xlu0 %1350
    %1352 = vrot.lane.b32.xlu0 %v1136, 48
    %v1353 = vpop.permute.xlu0 %1352
    %v1357 = vsel %vm183, %v1348, 0
    %v1360 = vsel %vm183, %v1349, 0
    %1362 = vmatpush.bf16.msra.mxu0 0
    %1363 = vmatpush.bf16.msra.mxu0 0
    %1364 = vmatpush.bf16.msra.mxu0 0
    %1365 = vmatpush.bf16.msra.mxu0 0
    %1366 = vmatpush.bf16.msra.mxu0 0
    %1367 = vmatpush.bf16.msra.mxu0 0
    %1368 = vmatpush.bf16.msra.mxu0 %v1353
    %1369 = vmatpush.bf16.msra.mxu0 %v1351
    %1370 = vmatmul.bf16.gmra.mxu0 %v1357
    %v1371 = vpop.f32.mrf.mxu0
    %v1372 = vadd.f32 0.0, %v1371
    %v1373 = vpop.f32.mrf.mxu0
    %v1374 = vadd.f32 0.0, %v1373
    %1375 = vmatmul.bf16.gmra.mxu0 %v1360
    %v1376 = vpop.f32.mrf.mxu0
    %v1377 = vadd.f32 0.0, %v1376
    %v1378 = vpop.f32.mrf.mxu0
    %v1379 = vadd.f32 0.0, %v1378
    %1380 = vdwg.mxu0
    %1385 = vrot.lane.b32.xlu0 %v1372, 16
    %v1386 = vpop.permute.xlu0 %1385
    %1387 = vrot.lane.b32.xlu0 %v1374, 16
    %v1388 = vpop.permute.xlu0 %1387
    %1389 = vrot.lane.b32.xlu0 %v1377, 16
    %v1390 = vpop.permute.xlu0 %1389
    %1391 = vrot.lane.b32.xlu0 %v1379, 16
    %v1392 = vpop.permute.xlu0 %1391
    %v1397 = vsel %vm420, %v1248, %v1386
    %v1398 = vsel %vm420, %v1250, %v1388
    %v1399 = vsel %vm420, %v1253, %v1390
    %v1400 = vsel %vm420, %v1255, %v1392
    %v1401 = vpack.c.bf16 %v1398, %v1397
    %v1402 = vpack.c.bf16 %v1400, %v1399
    %s1403 = scalar_lea.vmem %s6, 16
    %v1404 = vld [vmem:[%s1403] sm:$0xf]
    %v1405 = vld [vmem:[%s1403 + $0x4] sm:$0xf]
    %v1406 = vld [vmem:[%s1403 + $0x8] sm:$0xf]
    %v1407 = vld [vmem:[%s1403 + $0xc] sm:$0xf]
    %v1408 = vld [vmem:[#allocation2 + $0xab] sm:$0x1]
    %v1409 = vperm.slane %v1408, 0
    %v1414 = vunpack.c.l.b16 %v1404
    %v1415 = vunpack.c.l.b16 %v1405
    %v1416 = vunpack.c.l.b16 %v1406
    %v1417 = vunpack.c.l.b16 %v1407
    %v1418 = vpack.c.b16 %v1415, %v1414
    %v1419 = vpack.c.b16 %v1417, %v1416
    %v1423 = vsel %vm183, %v1401, 0
    %v1426 = vsel %vm183, %v1402, 0
    %1428 = vmatpush.bf16.msra.mxu0 0
    %1429 = vmatpush.bf16.msra.mxu0 0
    %1430 = vmatpush.bf16.msra.mxu0 0
    %1431 = vmatpush.bf16.msra.mxu0 0
    %1432 = vmatpush.bf16.msra.mxu0 0
    %1433 = vmatpush.bf16.msra.mxu0 0
    %1434 = vmatpush.bf16.msra.mxu0 %v1419
    %1435 = vmatpush.bf16.msra.mxu0 %v1418
    %1436 = vmatmul.bf16.gmra.mxu0 %v1423
    %v1437 = vpop.f32.mrf.mxu0
    %v1438 = vadd.f32 %v1409, %v1437
    %v1439 = vpop.f32.mrf.mxu0
    %v1440 = vadd.f32 %v1409, %v1439
    %1441 = vmatmul.bf16.gmra.mxu0 %v1426
    %v1442 = vpop.f32.mrf.mxu0
    %v1443 = vadd.f32 %v1409, %v1442
    %v1444 = vpop.f32.mrf.mxu0
    %v1445 = vadd.f32 %v1409, %v1444
    %1446 = vdwg.mxu0
    %v1447 = vadd.f32 %v1073, %v1438
    %v1448 = vadd.f32 %v1074, %v1440
    %v1449 = vadd.f32 %v1075, %v1443
    %v1450 = vadd.f32 %v1076, %v1445
    %v1451 = vld [vmem:[#allocation2 + $0xac] sm:$0x1]
    %v1452 = vld [vmem:[#allocation2 + $0xad] sm:$0x1]
    %v1453 = vsel %vm183, %v1447, 0.0
    %1454 = vadd.xlane.f32.xlu0 %v1453
    %v1455 = vpop.xlane.xlu0 %1454
    %v1456 = vsel %vm183, %v1448, 0.0
    %1457 = vadd.xlane.f32.xlu0 %v1456
    %v1458 = vpop.xlane.xlu0 %1457
    %v1459 = vsel %vm183, %v1449, 0.0
    %1460 = vadd.xlane.f32.xlu0 %v1459
    %v1461 = vpop.xlane.xlu0 %1460
    %v1462 = vsel %vm183, %v1450, 0.0
    %1463 = vadd.xlane.f32.xlu0 %v1462
    %v1464 = vpop.xlane.xlu0 %1463
    %v1465 = vmul.f32 %v1455, %v248
    %v1466 = vmul.f32 %v1458, %v248
    %v1467 = vmul.f32 %v1461, %v248
    %v1468 = vmul.f32 %v1464, %v248
    %v1469 = vsub.f32 %v1447, %v1465
    %v1470 = vsub.f32 %v1448, %v1466
    %v1471 = vsub.f32 %v1449, %v1467
    %v1472 = vsub.f32 %v1450, %v1468
    %v1473 = vmul.f32 %v1469, %v1469
    %v1474 = vmul.f32 %v1470, %v1470
    %v1475 = vmul.f32 %v1471, %v1471
    %v1476 = vmul.f32 %v1472, %v1472
    %v1477 = vsel %vm183, %v1473, 0.0
    %1478 = vadd.xlane.f32.xlu0 %v1477
    %v1479 = vpop.xlane.xlu0 %1478
    %v1480 = vsel %vm183, %v1474, 0.0
    %1481 = vadd.xlane.f32.xlu0 %v1480
    %v1482 = vpop.xlane.xlu0 %1481
    %v1483 = vsel %vm183, %v1475, 0.0
    %1484 = vadd.xlane.f32.xlu0 %v1483
    %v1485 = vpop.xlane.xlu0 %1484
    %v1486 = vsel %vm183, %v1476, 0.0
    %1487 = vadd.xlane.f32.xlu0 %v1486
    %v1488 = vpop.xlane.xlu0 %1487
    %v1489 = vmul.f32 %v1479, %v248
    %v1490 = vmul.f32 %v1482, %v248
    %v1491 = vmul.f32 %v1485, %v248
    %v1492 = vmul.f32 %v1488, %v248
    %v1493 = vadd.f32 %v1489, 1e-12
    %v1494 = vadd.f32 %v1490, 1e-12
    %v1495 = vadd.f32 %v1491, 1e-12
    %v1496 = vadd.f32 %v1492, 1e-12
    %v1497 = vrsqrt.pop %v1493
    %v1498 = vmul.f32 %v1497, %v1493
    %v1499 = vmul.f32 %v1498, %v1497
    %v1500 = vmul.f32 0.5, %v1499
    %v1501 = vsub.f32 1.5, %v1500
    %v1502 = vmul.f32 %v1497, %v1501
    %vm1503 = vweird.f32 %v1493
    %vm1504 = vweird.f32 %v1497
    %vm1505 = vmor %vm1503, %vm1504
    %v1506 = vsel %vm1505, %v1497, %v1502
    %v1507 = vrsqrt.pop %v1494
    %v1508 = vmul.f32 %v1507, %v1494
    %v1509 = vmul.f32 %v1508, %v1507
    %v1510 = vmul.f32 0.5, %v1509
    %v1511 = vsub.f32 1.5, %v1510
    %v1512 = vmul.f32 %v1507, %v1511
    %vm1513 = vweird.f32 %v1494
    %vm1514 = vweird.f32 %v1507
    %vm1515 = vmor %vm1513, %vm1514
    %v1516 = vsel %vm1515, %v1507, %v1512
    %v1517 = vrsqrt.pop %v1495
    %v1518 = vmul.f32 %v1517, %v1495
    %v1519 = vmul.f32 %v1518, %v1517
    %v1520 = vmul.f32 0.5, %v1519
    %v1521 = vsub.f32 1.5, %v1520
    %v1522 = vmul.f32 %v1517, %v1521
    %vm1523 = vweird.f32 %v1495
    %vm1524 = vweird.f32 %v1517
    %vm1525 = vmor %vm1523, %vm1524
    %v1526 = vsel %vm1525, %v1517, %v1522
    %v1527 = vrsqrt.pop %v1496
    %v1528 = vmul.f32 %v1527, %v1496
    %v1529 = vmul.f32 %v1528, %v1527
    %v1530 = vmul.f32 0.5, %v1529
    %v1531 = vsub.f32 1.5, %v1530
    %v1532 = vmul.f32 %v1527, %v1531
    %vm1533 = vweird.f32 %v1496
    %vm1534 = vweird.f32 %v1527
    %vm1535 = vmor %vm1533, %vm1534
    %v1536 = vsel %vm1535, %v1527, %v1532
    %v1537 = vmul.f32 %v1469, %v1506
    %v1538 = vmul.f32 %v1470, %v1516
    %v1539 = vmul.f32 %v1471, %v1526
    %v1540 = vmul.f32 %v1472, %v1536
    %v1541 = vperm.slane %v1451, 0
    %v1542 = vmul.f32 %v1537, %v1541
    %v1543 = vmul.f32 %v1538, %v1541
    %v1544 = vmul.f32 %v1539, %v1541
    %v1545 = vmul.f32 %v1540, %v1541
    %v1546 = vperm.slane %v1452, 0
    %v1547 = vadd.f32 %v1542, %v1546
    %v1548 = vadd.f32 %v1543, %v1546
    %v1549 = vadd.f32 %v1544, %v1546
    %v1550 = vadd.f32 %v1545, %v1546
    %v1551 = vpack.c.bf16 %v1548, %v1547
    %v1552 = vpack.c.bf16 %v1550, %v1549
    %s1553 = scalar_lea.vmem %s7, 16
    %v1554 = vld [vmem:[%s1553] sm:$0xf]
    %v1555 = vld [vmem:[%s1553 + $0x4] sm:$0xf]
    %v1556 = vld [vmem:[%s1553 + $0x8] sm:$0xf]
    %v1557 = vld [vmem:[%s1553 + $0xc] sm:$0xf]
    %v1558 = vld [vmem:[#allocation2 + $0xae] sm:$0x1]
    %v1559 = vperm.slane %v1558, 0
    %v1564 = vunpack.c.l.b16 %v1554
    %v1565 = vunpack.c.l.b16 %v1555
    %v1566 = vunpack.c.l.b16 %v1556
    %v1567 = vunpack.c.l.b16 %v1557
    %v1568 = vpack.c.b16 %v1565, %v1564
    %v1569 = vpack.c.b16 %v1567, %v1566
    %v1573 = vsel %vm183, %v1551, 0
    %v1576 = vsel %vm183, %v1552, 0
    %1578 = vmatpush.bf16.msra.mxu0 0
    %1579 = vmatpush.bf16.msra.mxu0 0
    %1580 = vmatpush.bf16.msra.mxu0 0
    %1581 = vmatpush.bf16.msra.mxu0 0
    %1582 = vmatpush.bf16.msra.mxu0 0
    %1583 = vmatpush.bf16.msra.mxu0 0
    %1584 = vmatpush.bf16.msra.mxu0 %v1569
    %1585 = vmatpush.bf16.msra.mxu0 %v1568
    %1586 = vmatmul.bf16.gmra.mxu0 %v1573
    %v1587 = vpop.f32.mrf.mxu0
    %v1588 = vadd.f32 %v1559, %v1587
    %v1589 = vpop.f32.mrf.mxu0
    %v1590 = vadd.f32 %v1559, %v1589
    %1591 = vmatmul.bf16.gmra.mxu0 %v1576
    %v1592 = vpop.f32.mrf.mxu0
    %v1593 = vadd.f32 %v1559, %v1592
    %v1594 = vpop.f32.mrf.mxu0
    %v1595 = vadd.f32 %v1559, %v1594
    %1596 = vdwg.mxu0
    %v1597 = vmul.f32 %v1588, 0.5
    %v1598 = vmul.f32 %v1590, 0.5
    %v1599 = vmul.f32 %v1593, 0.5
    %v1600 = vmul.f32 %v1595, 0.5
    %v1601 = vmul.f32 %v1588, 0.044715
    %v1602 = vmul.f32 %v1590, 0.044715
    %v1603 = vmul.f32 %v1593, 0.044715
    %v1604 = vmul.f32 %v1595, 0.044715
    %v1605 = vmul.f32 %v1601, %v1588
    %v1606 = vmul.f32 %v1602, %v1590
    %v1607 = vmul.f32 %v1603, %v1593
    %v1608 = vmul.f32 %v1604, %v1595
    %v1609 = vmul.f32 %v1605, %v1588
    %v1610 = vmul.f32 %v1606, %v1590
    %v1611 = vmul.f32 %v1607, %v1593
    %v1612 = vmul.f32 %v1608, %v1595
    %v1613 = vadd.f32 %v1588, %v1609
    %v1614 = vadd.f32 %v1590, %v1610
    %v1615 = vadd.f32 %v1593, %v1611
    %v1616 = vadd.f32 %v1595, %v1612
    %v1617 = vmul.f32 %v1613, 0.7978846
    %v1618 = vmul.f32 %v1614, 0.7978846
    %v1619 = vmul.f32 %v1615, 0.7978846
    %v1620 = vmul.f32 %v1616, 0.7978846
    %v1621 = vtanh.pop %v1617
    %v1622 = vtanh.pop %v1618
    %v1623 = vtanh.pop %v1619
    %v1624 = vtanh.pop %v1620
    %v1625 = vadd.f32 %v1621, 1.0
    %v1626 = vadd.f32 %v1622, 1.0
    %v1627 = vadd.f32 %v1623, 1.0
    %v1628 = vadd.f32 %v1624, 1.0
    %v1629 = vmul.f32 %v1597, %v1625
    %v1630 = vmul.f32 %v1598, %v1626
    %v1631 = vmul.f32 %v1599, %v1627
    %v1632 = vmul.f32 %v1600, %v1628
    %v1633 = vpack.c.bf16 %v1630, %v1629
    %v1634 = vpack.c.bf16 %v1632, %v1631
    %s1635 = scalar_lea.vmem %s8, 32
    %v1636 = vld [vmem:[%s1635] sm:$0xf]
    %v1637 = vld [vmem:[%s1635 + $0x4] sm:$0xf]
    %v1638 = vld [vmem:[%s1635 + $0x8] sm:$0xf]
    %v1639 = vld [vmem:[%s1635 + $0xc] sm:$0xf]
    %v1640 = vld [vmem:[%s1635 + $0x10] sm:$0xf]
    %v1641 = vld [vmem:[%s1635 + $0x14] sm:$0xf]
    %v1642 = vld [vmem:[%s1635 + $0x18] sm:$0xf]
    %v1643 = vld [vmem:[%s1635 + $0x1c] sm:$0xf]
    %v1644 = vld [vmem:[#allocation2 + $0xaf] sm:$0x1]
    %v1645 = vperm.slane %v1644, 0
    %v1654 = vunpack.c.l.b16 %v1636
    %v1655 = vunpack.c.l.b16 %v1637
    %v1656 = vunpack.c.l.b16 %v1638
    %v1657 = vunpack.c.l.b16 %v1639
    %v1658 = vunpack.c.l.b16 %v1640
    %v1659 = vunpack.c.l.b16 %v1641
    %v1660 = vunpack.c.l.b16 %v1642
    %v1661 = vunpack.c.l.b16 %v1643
    %v1662 = vpack.c.b16 %v1655, %v1654
    %v1663 = vpack.c.b16 %v1657, %v1656
    %v1664 = vpack.c.b16 %v1659, %v1658
    %v1665 = vpack.c.b16 %v1661, %v1660
    %v1671 = vsel %vm947, %v1633, 0
    %v1674 = vsel %vm947, %v1634, 0
    %1676 = vmatpush.bf16.msra.mxu0 0
    %1677 = vmatpush.bf16.msra.mxu0 0
    %1678 = vmatpush.bf16.msra.mxu0 0
    %1679 = vmatpush.bf16.msra.mxu0 0
    %1680 = vmatpush.bf16.msra.mxu0 %v1665
    %1681 = vmatpush.bf16.msra.mxu0 %v1664
    %1682 = vmatpush.bf16.msra.mxu0 %v1663
    %1683 = vmatpush.bf16.msra.mxu0 %v1662
    %1684 = vmatmul.bf16.gmra.mxu0 %v1671
    %v1685 = vpop.f32.mrf.mxu0
    %v1686 = vadd.f32 %v1645, %v1685
    %v1687 = vpop.f32.mrf.mxu0
    %v1688 = vadd.f32 %v1645, %v1687
    %1689 = vmatmul.bf16.gmra.mxu0 %v1674
    %v1690 = vpop.f32.mrf.mxu0
    %v1691 = vadd.f32 %v1645, %v1690
    %v1692 = vpop.f32.mrf.mxu0
    %v1693 = vadd.f32 %v1645, %v1692
    %1694 = vdwg.mxu0
    %v1695 = vadd.f32 %v1547, %v1686
    %v1696 = vadd.f32 %v1548, %v1688
    %v1697 = vadd.f32 %v1549, %v1691
    %v1698 = vadd.f32 %v1550, %v1693
    %v1699 = vld [vmem:[#allocation2 + $0xb0] sm:$0x1]
    %v1700 = vld [vmem:[#allocation2 + $0xb1] sm:$0x1]
    %v1701 = vsel %vm183, %v1695, 0.0
    %1702 = vadd.xlane.f32.xlu0 %v1701
    %v1703 = vpop.xlane.xlu0 %1702
    %v1704 = vsel %vm183, %v1696, 0.0
    %1705 = vadd.xlane.f32.xlu0 %v1704
    %v1706 = vpop.xlane.xlu0 %1705
    %v1707 = vsel %vm183, %v1697, 0.0
    %1708 = vadd.xlane.f32.xlu0 %v1707
    %v1709 = vpop.xlane.xlu0 %1708
    %v1710 = vsel %vm183, %v1698, 0.0
    %1711 = vadd.xlane.f32.xlu0 %v1710
    %v1712 = vpop.xlane.xlu0 %1711
    %v1713 = vmul.f32 %v1703, %v248
    %v1714 = vmul.f32 %v1706, %v248
    %v1715 = vmul.f32 %v1709, %v248
    %v1716 = vmul.f32 %v1712, %v248
    %v1717 = vsub.f32 %v1695, %v1713
    %v1718 = vsub.f32 %v1696, %v1714
    %v1719 = vsub.f32 %v1697, %v1715
    %v1720 = vsub.f32 %v1698, %v1716
    %v1721 = vmul.f32 %v1717, %v1717
    %v1722 = vmul.f32 %v1718, %v1718
    %v1723 = vmul.f32 %v1719, %v1719
    %v1724 = vmul.f32 %v1720, %v1720
    %v1725 = vsel %vm183, %v1721, 0.0
    %1726 = vadd.xlane.f32.xlu0 %v1725
    %v1727 = vpop.xlane.xlu0 %1726
    %v1728 = vsel %vm183, %v1722, 0.0
    %1729 = vadd.xlane.f32.xlu0 %v1728
    %v1730 = vpop.xlane.xlu0 %1729
    %v1731 = vsel %vm183, %v1723, 0.0
    %1732 = vadd.xlane.f32.xlu0 %v1731
    %v1733 = vpop.xlane.xlu0 %1732
    %v1734 = vsel %vm183, %v1724, 0.0
    %1735 = vadd.xlane.f32.xlu0 %v1734
    %v1736 = vpop.xlane.xlu0 %1735
    %v1737 = vmul.f32 %v1727, %v248
    %v1738 = vmul.f32 %v1730, %v248
    %v1739 = vmul.f32 %v1733, %v248
    %v1740 = vmul.f32 %v1736, %v248
    %v1741 = vadd.f32 %v1737, 1e-12
    %v1742 = vadd.f32 %v1738, 1e-12
    %v1743 = vadd.f32 %v1739, 1e-12
    %v1744 = vadd.f32 %v1740, 1e-12
    %v1745 = vrsqrt.pop %v1741
    %v1746 = vmul.f32 %v1745, %v1741
    %v1747 = vmul.f32 %v1746, %v1745
    %v1748 = vmul.f32 0.5, %v1747
    %v1749 = vsub.f32 1.5, %v1748
    %v1750 = vmul.f32 %v1745, %v1749
    %vm1751 = vweird.f32 %v1741
    %vm1752 = vweird.f32 %v1745
    %vm1753 = vmor %vm1751, %vm1752
    %v1754 = vsel %vm1753, %v1745, %v1750
    %v1755 = vrsqrt.pop %v1742
    %v1756 = vmul.f32 %v1755, %v1742
    %v1757 = vmul.f32 %v1756, %v1755
    %v1758 = vmul.f32 0.5, %v1757
    %v1759 = vsub.f32 1.5, %v1758
    %v1760 = vmul.f32 %v1755, %v1759
    %vm1761 = vweird.f32 %v1742
    %vm1762 = vweird.f32 %v1755
    %vm1763 = vmor %vm1761, %vm1762
    %v1764 = vsel %vm1763, %v1755, %v1760
    %v1765 = vrsqrt.pop %v1743
    %v1766 = vmul.f32 %v1765, %v1743
    %v1767 = vmul.f32 %v1766, %v1765
    %v1768 = vmul.f32 0.5, %v1767
    %v1769 = vsub.f32 1.5, %v1768
    %v1770 = vmul.f32 %v1765, %v1769
    %vm1771 = vweird.f32 %v1743
    %vm1772 = vweird.f32 %v1765
    %vm1773 = vmor %vm1771, %vm1772
    %v1774 = vsel %vm1773, %v1765, %v1770
    %v1775 = vrsqrt.pop %v1744
    %v1776 = vmul.f32 %v1775, %v1744
    %v1777 = vmul.f32 %v1776, %v1775
    %v1778 = vmul.f32 0.5, %v1777
    %v1779 = vsub.f32 1.5, %v1778
    %v1780 = vmul.f32 %v1775, %v1779
    %vm1781 = vweird.f32 %v1744
    %vm1782 = vweird.f32 %v1775
    %vm1783 = vmor %vm1781, %vm1782
    %v1784 = vsel %vm1783, %v1775, %v1780
    %v1785 = vmul.f32 %v1717, %v1754
    %v1786 = vmul.f32 %v1718, %v1764
    %v1787 = vmul.f32 %v1719, %v1774
    %v1788 = vmul.f32 %v1720, %v1784
    %v1789 = vperm.slane %v1699, 0
    %v1790 = vmul.f32 %v1785, %v1789
    %v1791 = vmul.f32 %v1786, %v1789
    %v1792 = vmul.f32 %v1787, %v1789
    %v1793 = vmul.f32 %v1788, %v1789
    %v1794 = vperm.slane %v1700, 0
    %v1795 = vadd.f32 %v1790, %v1794
    %v1796 = vadd.f32 %v1791, %v1794
    %v1797 = vadd.f32 %v1792, %v1794
    %v1798 = vadd.f32 %v1793, %v1794
    %vm1799 = vcmp.eq.s32.totalorder %v49, 103
    %vm1800 = vcmp.eq.s32.totalorder %v50, 103
    %vm1801 = vcmp.eq.s32.totalorder %v51, 103
    %vm1802 = vcmp.eq.s32.totalorder %v52, 103
    %v1803 = vsel %vm1799, 1, 0
    %v1804 = vsel %vm1800, 1, 0
    %v1805 = vsel %vm1801, 1, 0
    %v1806 = vsel %vm1802, 1, 0
    %v1807 = vcvt.s32.f32 %v1803
    %v1808 = vcvt.s32.f32 %v1804
    %v1809 = vcvt.s32.f32 %v1805
    %v1810 = vcvt.s32.f32 %v1806
    %vm1811 = vcmp.eq.s32.totalorder %v61, %v339
    %v1812 = vsel %vm1811, 1.0, 0.0
    %1814 = vset.pattern.permute.xlu0 0
    %1815 = vperm.xlu0 %1814, %v1807
    %v1816 = vpop.permute.xlu0 %1815
    %1819 = vset.pattern.permute.xlu0 0
    %1820 = vperm.xlu0 %1819, %v1808
    %v1821 = vpop.permute.xlu0 %1820
    %1824 = vset.pattern.permute.xlu0 0
    %1825 = vperm.xlu0 %1824, %v1809
    %v1826 = vpop.permute.xlu0 %1825
    %1829 = vset.pattern.permute.xlu0 0
    %1830 = vperm.xlu0 %1829, %v1810
    %v1831 = vpop.permute.xlu0 %1830
    %v1833 = vmul.f32 %v1795, %v1816
    %v1834 = vmul.f32 %v1796, %v1821
    %v1835 = vmul.f32 %v1797, %v1826
    %v1836 = vmul.f32 %v1798, %v1831
    %v1838 = vsel %vm183, %v1812, 0
    %1840 = vmatpush.msra.mxu0 0.0
    %1841 = vmatpush.msra.mxu0 0.0
    %1842 = vmatpush.msra.mxu0 0.0
    %1843 = vmatpush.msra.mxu0 0.0
    %1844 = vmatpush.msra.mxu0 0.0
    %1845 = vmatpush.msra.mxu0 0.0
    %1846 = vmatpush.msra.mxu0 0.0
    %1847 = vmatpush.msra.mxu0 0.0
    %1848 = vmatpush.msra.mxu0 0.0
    %1849 = vmatpush.msra.mxu0 0.0
    %1850 = vmatpush.msra.mxu0 0.0
    %1851 = vmatpush.msra.mxu0 0.0
    %1852 = vmatpush.msra.mxu0 %v1836
    %1853 = vmatpush.msra.mxu0 %v1835
    %1854 = vmatpush.msra.mxu0 %v1834
    %1855 = vmatpush.msra.mxu0 %v1833
    %1856 = vmatmul.f32.gmra.mxu0 %v1838
    %v1857 = vpop.f32.mrf.mxu0
    %v1858 = vadd.f32 0.0, %v1857
    %1859 = vdwg.mxu0
    %v1860 = vld [vmem:[#allocation2 + $0xb2] sm:$0x1]
    %v1861 = vperm.slane %v1860, 0
    %v1862 = vmul.f32 %v1858, %v1861
    %vm1863 = vcmask 257024
    %v1864 = vsel %vm1863, %v1862, 0.0
    %1865 = vadd.xlane.f32.xlu0 %v1864
    %v1866 = vpop.xlane.xlu0 %1865
    %v1867 = vld [vmem:[#allocation2 + $0xb3] sm:$0x1]
    %v1868 = vperm.slane %v1867, 0
    %v1869 = vadd.f32 %v1866, %v1868
    %v1870 = vld [vmem:[%s3] sm:$0xf]
    %v1871 = vmax.f32 %v1869, 0.0
    %v1872 = vmul.f32 %v1869, %v1870
    %v1873 = vsub.f32 %v1871, %v1872
    %v1874 = vand.u32 2147483647, %v1869
    %v1875 = vsub.f32 0.0, %v1874
    %v1876 = vmul.f32 %v1875, 1.442695
    %v1877 = vpow.pop %v1876
    %v1878 = vadd.f32 %v1877, 1.0
    %v1879 = vlog2.pop %v1878
    %v1880 = vmul.f32 %v1879, 0.6931472
    %v1881 = vadd.f32 %v1873, %v1880
    %vm1882 = vcmask 3072
    %v1883 = vsel %vm1882, %v1881, 0.0
    %v1884 = vrot.slane %v1883, 4
    %v1885 = vadd.f32 %v1883, %v1884
    %v1886 = vrot.slane %v1885, 2
    %v1887 = vadd.f32 %v1885, %v1886
    %v1888 = vrot.slane %v1887, 1
    %v1889 = vadd.f32 %v1887, %v1888
    %v1890 = vmul.f32 %v1889, 0.25
    %1891 = vst [vmem:[%s9] sm:$0xff] 0.0
    %1892 = vst.msk [vmem:[%s9] sm:$0xf] %vm1863, %v1858
    %1894 = vrot.lane.b32.xlu0 %v1869, 32
    %v1895 = vpop.permute.xlu0 %1894
    %vm1897 = vcmask 265472
    %1898 = vst.msk [vmem:[%s9] sm:$0xf] %vm1897, %v1895
    %1900 = vrot.lane.b32.xlu0 %v1890, 33
    %v1901 = vpop.permute.xlu0 %1900
    %vm1903 = vcmask 270600
    %1904 = vst.msk [vmem:[%s9] sm:$0x1] %vm1903, %v1901
    // Predicated region
    $region42: #{_forward_impl.1} parent=1 // pred_check
      _
    $region43: #{_forward_impl.1} parent=1 // pred_check_branch
      %1906 = sbr.rel (0) target = $region45
    $region44: #{_forward_impl.1} parent=1 // pred_region
      _
    $region45: #{_forward_impl.1} parent=1 // pred_fallthru
      _
    // Predicated region
    $region46: #{_forward_impl.1} parent=1 // pred_check
      _
    $region47: #{_forward_impl.1} parent=1 // pred_check_branch
      %1908 = sbr.rel (0) target = $region49
    $region48: #{_forward_impl.1} parent=1 // pred_region
      _
    $region49: #{_forward_impl.1} parent=1 // pred_fallthru
      _
    %1909 = vsyncpa [#allocation3], 1

</llo_original>
